<compile_context>
chip_gen: v6e
topology: v6e:2x2x1
jax: 0.10.0
libtpu: 0.0.40
codegen_flags: <defaults>
</compile_context>

<pallas_src>
import functools

import jax
import jax.numpy as jnp
from jax.experimental import pallas as pl
from jax.experimental.pallas import tpu as pltpu

# ---- small synthetic BERT config ----
VOCAB = 64
MAX_POS = 16
HIDDEN = 32
NUM_HEADS = 2
HEAD_DIM = HIDDEN // NUM_HEADS
FFN = 64
NUM_LAYERS = 2
NUM_CLASSES = 2
LN_EPS = 1e-12


# ---------------- Pallas kernels ----------------

def _embed_kernel(we_ref, pos_ref, type_ref, g_ref, b_ref, o_ref):
    # we: (1, S, H) word-level embeds; pos: (S, H); type: (1, H); g/b: (1, H)
    e = we_ref[0].astype(jnp.float32) + pos_ref[...] + type_ref[...]
    mu = jnp.mean(e, axis=-1, keepdims=True)
    var = jnp.mean(jnp.square(e - mu), axis=-1, keepdims=True)
    y = (e - mu) * jax.lax.rsqrt(var + LN_EPS)
    o_ref[0] = (y * g_ref[...] + b_ref[...]).astype(o_ref.dtype)


def embed_process(params, word_level_embeds):
    """Position + token-type add, then LayerNorm (HF BertEmbeddings, eval mode).

    Dropout is an eval-mode no-op.
    """
    B, S, H = word_level_embeds.shape
    pos = params["pos_emb"][:S]        # (S, H) glue slice
    typ = params["type_emb"][0:1]      # (1, H): token_type_ids == 0
    return pl.pallas_call(
        _embed_kernel,
        out_shape=jax.ShapeDtypeStruct((B, S, H), jnp.float32),
        grid=(B,),
        in_specs=[
            pl.BlockSpec((1, S, H), lambda b: (b, 0, 0)),
            pl.BlockSpec((S, H), lambda b: (0, 0)),
            pl.BlockSpec((1, H), lambda b: (0, 0)),
            pl.BlockSpec((1, H), lambda b: (0, 0)),
            pl.BlockSpec((1, H), lambda b: (0, 0)),
        ],
        out_specs=pl.BlockSpec((1, S, H), lambda b: (b, 0, 0)),
        compiler_params=pltpu.CompilerParams(dimension_semantics=("parallel",)),
    )(word_level_embeds, pos, typ, params["emb_ln_g"], params["emb_ln_b"])


def _encoder_layer_kernel(x_ref, bias_ref,
                          wq_ref, bq_ref, wk_ref, bk_ref, wv_ref, bv_ref,
                          wo_ref, bo_ref, ln1g_ref, ln1b_ref,
                          w1_ref, b1_ref, w2_ref, b2_ref, ln2g_ref, ln2b_ref,
                          o_ref):
    # One whole BERT encoder layer for one batch element.
    x = x_ref[0].astype(jnp.float32)          # (S, H)
    bias = bias_ref[0]                        # (1, S) additive mask, bcast over q-rows
    scale = 1.0 / float(HEAD_DIM) ** 0.5

    # ---- multi-head self-attention (heads statically unrolled) ----
    # Per-head weight slabs (NUM_HEADS, H, HEAD_DIM) avoid lane slicing; the
    # output projection is accumulated head-by-head so no concat is needed.
    ctx = jnp.zeros(x.shape, jnp.float32)     # (S, H)
    for h in range(NUM_HEADS):
        qh = jnp.dot(x, wq_ref[h], preferred_element_type=jnp.float32) + bq_ref[h]
        kh = jnp.dot(x, wk_ref[h], preferred_element_type=jnp.float32) + bk_ref[h]
        vh = jnp.dot(x, wv_ref[h], preferred_element_type=jnp.float32) + bv_ref[h]
        # q @ k^T expressed directly as a contraction (no explicit transpose).
        s = jax.lax.dot_general(qh, kh, (((1,), (1,)), ((), ())),
                                preferred_element_type=jnp.float32)
        s = s * scale + bias
        s = s - jnp.max(s, axis=-1, keepdims=True)
        p = jnp.exp(s)
        p = p * pl.reciprocal(jnp.sum(p, axis=-1, keepdims=True), approx=True)
        ph = jnp.dot(p, vh, preferred_element_type=jnp.float32)          # (S, HD)
        ctx = ctx + jnp.dot(ph, wo_ref[h], preferred_element_type=jnp.float32)
    attn_out = ctx + bo_ref[...]

    # ---- residual + LayerNorm 1 ----
    h1 = attn_out + x
    mu = jnp.mean(h1, axis=-1, keepdims=True)
    var = jnp.mean(jnp.square(h1 - mu), axis=-1, keepdims=True)
    h1 = (h1 - mu) * jax.lax.rsqrt(var + LN_EPS)
    h1 = h1 * ln1g_ref[...] + ln1b_ref[...]

    # ---- FFN: dense -> exact (erf) GELU -> dense ----
    # (exact GELU kept for BERT fidelity; tanh-approx would also be acceptable)
    f = jnp.dot(h1, w1_ref[...], preferred_element_type=jnp.float32) + b1_ref[...]
    f = 0.5 * f * (1.0 + jax.lax.erf(f * (1.0 / 2.0 ** 0.5)))
    f = jnp.dot(f, w2_ref[...], preferred_element_type=jnp.float32) + b2_ref[...]

    # ---- residual + LayerNorm 2 ----
    h2 = f + h1
    mu2 = jnp.mean(h2, axis=-1, keepdims=True)
    var2 = jnp.mean(jnp.square(h2 - mu2), axis=-1, keepdims=True)
    h2 = (h2 - mu2) * jax.lax.rsqrt(var2 + LN_EPS)
    o_ref[0] = (h2 * ln2g_ref[...] + ln2b_ref[...]).astype(o_ref.dtype)


def encoder_layer(h, bias, layer):
    B, S, H = h.shape
    # Wrapper-side layout plumbing: per-head weight slabs (no in-kernel slicing).
    wq = layer["wq"].reshape(H, NUM_HEADS, HEAD_DIM).transpose(1, 0, 2)   # (NH, H, HD)
    wk = layer["wk"].reshape(H, NUM_HEADS, HEAD_DIM).transpose(1, 0, 2)
    wv = layer["wv"].reshape(H, NUM_HEADS, HEAD_DIM).transpose(1, 0, 2)
    bq = layer["bq"].reshape(NUM_HEADS, 1, HEAD_DIM)
    bk = layer["bk"].reshape(NUM_HEADS, 1, HEAD_DIM)
    bv = layer["bv"].reshape(NUM_HEADS, 1, HEAD_DIM)
    wo = layer["wo"].reshape(NUM_HEADS, HEAD_DIM, H)                      # (NH, HD, H)

    def full(shape):
        return pl.BlockSpec(shape, lambda b, _s=shape: (0,) * len(_s))

    return pl.pallas_call(
        _encoder_layer_kernel,
        out_shape=jax.ShapeDtypeStruct((B, S, H), jnp.float32),
        grid=(B,),
        in_specs=[
            pl.BlockSpec((1, S, H), lambda b: (b, 0, 0)),
            pl.BlockSpec((1, 1, S), lambda b: (b, 0, 0)),
            full((NUM_HEADS, H, HEAD_DIM)), full((NUM_HEADS, 1, HEAD_DIM)),
            full((NUM_HEADS, H, HEAD_DIM)), full((NUM_HEADS, 1, HEAD_DIM)),
            full((NUM_HEADS, H, HEAD_DIM)), full((NUM_HEADS, 1, HEAD_DIM)),
            full((NUM_HEADS, HEAD_DIM, H)), full((1, H)),
            full((1, H)), full((1, H)),
            full((H, FFN)), full((1, FFN)),
            full((FFN, H)), full((1, H)),
            full((1, H)), full((1, H)),
        ],
        out_specs=pl.BlockSpec((1, S, H), lambda b: (b, 0, 0)),
        compiler_params=pltpu.CompilerParams(dimension_semantics=("parallel",)),
    )(h, bias, wq, bq, wk, bk, wv, bv, wo, layer["bo"],
      layer["ln1_g"], layer["ln1_b"], layer["w1"], layer["b1"],
      layer["w2"], layer["b2"], layer["ln2_g"], layer["ln2_b"])


# ---------------- model glue (plain JAX around the kernels) ----------------

def init_params(key):
    def nrm(k, shape, scale=0.02):
        return scale * jax.random.normal(k, shape, dtype=jnp.float32)

    keys = jax.random.split(key, 8 + NUM_LAYERS)
    p = {
        "word_emb": nrm(keys[0], (VOCAB, HIDDEN)),
        "pos_emb": nrm(keys[1], (MAX_POS, HIDDEN)),
        "type_emb": nrm(keys[2], (2, HIDDEN)),
        "emb_ln_g": jnp.ones((1, HIDDEN), jnp.float32),
        "emb_ln_b": jnp.zeros((1, HIDDEN), jnp.float32),
        "cls_w": nrm(keys[3], (HIDDEN, NUM_CLASSES)),
        "cls_b": jnp.zeros((1, NUM_CLASSES), jnp.float32),
        "layers": [],
    }
    for i in range(NUM_LAYERS):
        lk = jax.random.split(keys[8 + i], 6)
        p["layers"].append({
            "wq": nrm(lk[0], (HIDDEN, HIDDEN)), "bq": jnp.zeros((1, HIDDEN), jnp.float32),
            "wk": nrm(lk[1], (HIDDEN, HIDDEN)), "bk": jnp.zeros((1, HIDDEN), jnp.float32),
            "wv": nrm(lk[2], (HIDDEN, HIDDEN)), "bv": jnp.zeros((1, HIDDEN), jnp.float32),
            "wo": nrm(lk[3], (HIDDEN, HIDDEN)), "bo": jnp.zeros((1, HIDDEN), jnp.float32),
            "ln1_g": jnp.ones((1, HIDDEN), jnp.float32), "ln1_b": jnp.zeros((1, HIDDEN), jnp.float32),
            "w1": nrm(lk[4], (HIDDEN, FFN)), "b1": jnp.zeros((1, FFN), jnp.float32),
            "w2": nrm(lk[5], (FFN, HIDDEN)), "b2": jnp.zeros((1, HIDDEN), jnp.float32),
            "ln2_g": jnp.ones((1, HIDDEN), jnp.float32), "ln2_b": jnp.zeros((1, HIDDEN), jnp.float32),
        })
    return p


def bert_encoder(params, h, attention_mask):
    B, S, _ = h.shape
    bias = ((1.0 - attention_mask.astype(jnp.float32)) * -1e9).reshape(B, 1, S)
    for layer in params["layers"]:
        h = encoder_layer(h, bias, layer)
    return h  # last_hidden_state


def backbone_forward(params, input_ids=None, inputs_embeds=None, attention_mask=None):
    # equivalent of backbone(input_ids=... / inputs_embeds=..., attention_mask=...)
    if inputs_embeds is None:
        # TODO(synk): data-dependent embedding-table gather stays in plain JAX.
        inputs_embeds = jnp.take(params["word_emb"], input_ids, axis=0)
    # NOTE: matching HF BertModel (and hence the reference BertMixUp): inputs_embeds
    # are treated as *word-level* embeddings, so pos/type add + LayerNorm are
    # applied here even when already-processed mixed embeddings are passed in.
    e = embed_process(params, inputs_embeds)
    return bert_encoder(params, e, attention_mask)


def classifier(params, cls):
    # NUM_CLASSES=2 keeps the lane dim far below 128 -> plain JAX, not a kernel.
    return cls @ params["cls_w"] + params["cls_b"]


@functools.partial(jax.jit, static_argnames=("mixup_type",))
def bert_mixup_forward(params, x, mask, lam=None, x2=None, mask2=None,
                       mixup_type="none"):
    if mixup_type == "embedding" and x2 is not None and mask2 is not None and lam is not None:
        B = x.shape[0]
        # One batched embedding pass for both sentences (2B rows), then mix.
        we = jnp.take(params["word_emb"], jnp.concatenate([x, x2], axis=0), axis=0)
        e = embed_process(params, we)
        mixed = lam * e[:B] + (1.0 - lam) * e[B:]
        m = jnp.bitwise_or(mask2, mask)
        last = backbone_forward(params, inputs_embeds=mixed, attention_mask=m)
        return classifier(params, last[:, 0, :])
    elif mixup_type == "sentences" and x2 is not None and mask2 is not None and lam is not None:
        B = x.shape[0]
        # One batched backbone pass (B -> 2B) instead of two serial passes.
        xx = jnp.concatenate([x, x2], axis=0)
        mm = jnp.concatenate([mask, mask2], axis=0)
        last = backbone_forward(params, input_ids=xx, attention_mask=mm)
        cls = last[:, 0, :]
        mixed_cls = lam * cls[:B] + (1.0 - lam) * cls[B:]
        return classifier(params, mixed_cls)
    else:
        last = backbone_forward(params, input_ids=x, attention_mask=mask)
        return classifier(params, last[:, 0, :])


if __name__ == "__main__":
    key = jax.random.PRNGKey(0)
    kp, kx, kx2 = jax.random.split(key, 3)

    B, S = 2, 8
    params = init_params(kp)
    x = jax.random.randint(kx, (B, S), 0, VOCAB, dtype=jnp.int32)
    x2 = jax.random.randint(kx2, (B, S), 0, VOCAB, dtype=jnp.int32)
    mask = jnp.ones((B, S), jnp.int32).at[:, -2:].set(0)
    mask2 = jnp.ones((B, S), jnp.int32).at[:, -1:].set(0)

    # default path (mixup_type='none')
    logits = bert_mixup_forward(params, x, mask, mixup_type="none")
    jax.block_until_ready(logits)
    assert logits.shape == (B, NUM_CLASSES)

    # also exercise the two mixup paths once
    logits_emb = bert_mixup_forward(params, x, mask, lam=0.3, x2=x2, mask2=mask2,
                                    mixup_type="embedding")
    logits_sent = bert_mixup_forward(params, x, mask, lam=0.3, x2=x2, mask2=mask2,
                                     mixup_type="sentences")
    jax.block_until_ready((logits_emb, logits_sent))
    assert logits_emb.shape == (B, NUM_CLASSES)
    assert logits_sent.shape == (B, NUM_CLASSES)

    print("KERNEL_OK")
</pallas_src>

<mosaic_0001>
module attributes {stable_mosaic.version = 11 : i64} {
  func.func @_embed_kernel(%arg0: i32, %arg1: memref<1x8x32xf32, #tpu.memory_space<vmem>>, %arg2: memref<8x32xf32, #tpu.memory_space<vmem>>, %arg3: memref<1x32xf32, #tpu.memory_space<vmem>>, %arg4: memref<1x32xf32, #tpu.memory_space<vmem>>, %arg5: memref<1x32xf32, #tpu.memory_space<vmem>>, %arg6: memref<1x8x32xf32, #tpu.memory_space<vmem>>) attributes {dimension_semantics = [#tpu.dimension_semantics<parallel>], iteration_bounds = array<i64: 2>, scalar_prefetch = 0 : i64, scratch_operands = 0 : i64, tpu.core_type = #tpu.core_type<tc>, window_params = [{transform_indices = @transform_0, window_bounds = array<i64: 1, 8, 32>}, {pipeline_mode = #tpu.pipeline_mode<synchronous>, transform_indices = @transform_1, window_bounds = array<i64: 8, 32>}, {pipeline_mode = #tpu.pipeline_mode<synchronous>, transform_indices = @transform_2, window_bounds = array<i64: 1, 32>}, {pipeline_mode = #tpu.pipeline_mode<synchronous>, transform_indices = @transform_3, window_bounds = array<i64: 1, 32>}, {pipeline_mode = #tpu.pipeline_mode<synchronous>, transform_indices = @transform_4, window_bounds = array<i64: 1, 32>}, {transform_indices = @transform_5, window_bounds = array<i64: 1, 8, 32>}]} {
    %c0 = arith.constant 0 : index
    %c0_0 = arith.constant 0 : index
    %c0_1 = arith.constant 0 : index
    %0 = vector.load %arg1[%c0, %c0_0, %c0_1] : memref<1x8x32xf32, #tpu.memory_space<vmem>>, vector<1x8x32xf32>
    %1 = vector.shape_cast %0 : vector<1x8x32xf32> to vector<8x32xf32>
    %c0_2 = arith.constant 0 : index
    %c0_3 = arith.constant 0 : index
    %2 = vector.load %arg2[%c0_2, %c0_3] : memref<8x32xf32, #tpu.memory_space<vmem>>, vector<8x32xf32>
    %3 = arith.addf %1, %2 : vector<8x32xf32>
    %c0_4 = arith.constant 0 : index
    %c0_5 = arith.constant 0 : index
    %4 = vector.load %arg3[%c0_4, %c0_5] : memref<1x32xf32, #tpu.memory_space<vmem>>, vector<1x32xf32>
    %5 = vector.broadcast %4 : vector<1x32xf32> to vector<8x32xf32>
    %6 = arith.addf %3, %5 : vector<8x32xf32>
    %cst = arith.constant dense<0.000000e+00> : vector<8xf32>
    %7 = vector.multi_reduction <add>, %6, %cst [1] : vector<8x32xf32> to vector<8xf32>
    %8 = vector.shape_cast %7 : vector<8xf32> to vector<8x1xf32>
    %cst_6 = arith.constant 3.200000e+01 : f32
    %9 = vector.broadcast %cst_6 : f32 to vector<8x1xf32>
    %10 = arith.divf %8, %9 : vector<8x1xf32>
    %11 = vector.broadcast %10 : vector<8x1xf32> to vector<8x32xf32>
    %12 = arith.subf %6, %11 : vector<8x32xf32>
    %13 = arith.mulf %12, %12 : vector<8x32xf32>
    %cst_7 = arith.constant dense<0.000000e+00> : vector<8xf32>
    %14 = vector.multi_reduction <add>, %13, %cst_7 [1] : vector<8x32xf32> to vector<8xf32>
    %15 = vector.shape_cast %14 : vector<8xf32> to vector<8x1xf32>
    %cst_8 = arith.constant 3.200000e+01 : f32
    %16 = vector.broadcast %cst_8 : f32 to vector<8x1xf32>
    %17 = arith.divf %15, %16 : vector<8x1xf32>
    %18 = vector.broadcast %10 : vector<8x1xf32> to vector<8x32xf32>
    %19 = arith.subf %6, %18 : vector<8x32xf32>
    %cst_9 = arith.constant 9.99999996E-13 : f32
    %20 = vector.broadcast %cst_9 : f32 to vector<8x1xf32>
    %21 = arith.addf %17, %20 : vector<8x1xf32>
    %22 = math.rsqrt %21 : vector<8x1xf32>
    %23 = vector.broadcast %22 : vector<8x1xf32> to vector<8x32xf32>
    %24 = arith.mulf %19, %23 : vector<8x32xf32>
    %c0_10 = arith.constant 0 : index
    %c0_11 = arith.constant 0 : index
    %25 = vector.load %arg4[%c0_10, %c0_11] : memref<1x32xf32, #tpu.memory_space<vmem>>, vector<1x32xf32>
    %26 = vector.broadcast %25 : vector<1x32xf32> to vector<8x32xf32>
    %27 = arith.mulf %24, %26 : vector<8x32xf32>
    %c0_12 = arith.constant 0 : index
    %c0_13 = arith.constant 0 : index
    %28 = vector.load %arg5[%c0_12, %c0_13] : memref<1x32xf32, #tpu.memory_space<vmem>>, vector<1x32xf32>
    %29 = vector.broadcast %28 : vector<1x32xf32> to vector<8x32xf32>
    %30 = arith.addf %27, %29 : vector<8x32xf32>
    %c0_14 = arith.constant 0 : index
    %c0_15 = arith.constant 0 : index
    %c0_16 = arith.constant 0 : index
    %31 = vector.load %arg6[%c0_14, %c0_15, %c0_16] : memref<1x8x32xf32, #tpu.memory_space<vmem>>, vector<1x8x32xf32>
    %32 = vector.shape_cast %31 : vector<1x8x32xf32> to vector<8x32xf32>
    %33 = vector.shape_cast %30 : vector<8x32xf32> to vector<1x8x32xf32>
    tpu.vector_store %arg6[%c0_14, %c0_15, %c0_16], %33 {strides = array<i32>} : memref<1x8x32xf32, #tpu.memory_space<vmem>>, vector<1x8x32xf32>,
    return
  }
  func.func @transform_0(%arg0: i32) -> (i32, i32, i32) {
    %c0_i32 = arith.constant 0 : i32
    %c0_i32_0 = arith.constant 0 : i32
    %c0_i32_1 = arith.constant 0 : i32
    return %arg0, %c0_i32, %c0_i32_0 : i32, i32, i32
  }
  func.func @transform_1(%arg0: i32) -> (i32, i32) {
    %c0_i32 = arith.constant 0 : i32
    %c0_i32_0 = arith.constant 0 : i32
    %c0_i32_1 = arith.constant 0 : i32
    return %c0_i32, %c0_i32_0 : i32, i32
  }
  func.func @transform_2(%arg0: i32) -> (i32, i32) {
    %c0_i32 = arith.constant 0 : i32
    %c0_i32_0 = arith.constant 0 : i32
    %c0_i32_1 = arith.constant 0 : i32
    return %c0_i32, %c0_i32_0 : i32, i32
  }
  func.func @transform_3(%arg0: i32) -> (i32, i32) {
    %c0_i32 = arith.constant 0 : i32
    %c0_i32_0 = arith.constant 0 : i32
    %c0_i32_1 = arith.constant 0 : i32
    return %c0_i32, %c0_i32_0 : i32, i32
  }
  func.func @transform_4(%arg0: i32) -> (i32, i32) {
    %c0_i32 = arith.constant 0 : i32
    %c0_i32_0 = arith.constant 0 : i32
    %c0_i32_1 = arith.constant 0 : i32
    return %c0_i32, %c0_i32_0 : i32, i32
  }
  func.func @transform_5(%arg0: i32) -> (i32, i32, i32) {
    %c0_i32 = arith.constant 0 : i32
    %c0_i32_0 = arith.constant 0 : i32
    %c0_i32_1 = arith.constant 0 : i32
    return %arg0, %c0_i32, %c0_i32_0 : i32, i32, i32
  }
}

module attributes {stable_mosaic.version = 11 : i64} {
  func.func @_encoder_layer_kernel(%arg0: i32, %arg1: memref<1x8x32xf32, #tpu.memory_space<vmem>>, %arg2: memref<1x1x8xf32, #tpu.memory_space<vmem>>, %arg3: memref<2x32x16xf32, #tpu.memory_space<vmem>>, %arg4: memref<2x1x16xf32, #tpu.memory_space<vmem>>, %arg5: memref<2x32x16xf32, #tpu.memory_space<vmem>>, %arg6: memref<2x1x16xf32, #tpu.memory_space<vmem>>, %arg7: memref<2x32x16xf32, #tpu.memory_space<vmem>>, %arg8: memref<2x1x16xf32, #tpu.memory_space<vmem>>, %arg9: memref<2x16x32xf32, #tpu.memory_space<vmem>>, %arg10: memref<1x32xf32, #tpu.memory_space<vmem>>, %arg11: memref<1x32xf32, #tpu.memory_space<vmem>>, %arg12: memref<1x32xf32, #tpu.memory_space<vmem>>, %arg13: memref<32x64xf32, #tpu.memory_space<vmem>>, %arg14: memref<1x64xf32, #tpu.memory_space<vmem>>, %arg15: memref<64x32xf32, #tpu.memory_space<vmem>>, %arg16: memref<1x32xf32, #tpu.memory_space<vmem>>, %arg17: memref<1x32xf32, #tpu.memory_space<vmem>>, %arg18: memref<1x32xf32, #tpu.memory_space<vmem>>, %arg19: memref<1x8x32xf32, #tpu.memory_space<vmem>>) attributes {dimension_semantics = [#tpu.dimension_semantics<parallel>], iteration_bounds = array<i64: 2>, scalar_prefetch = 0 : i64, scratch_operands = 0 : i64, tpu.core_type = #tpu.core_type<tc>, window_params = [{transform_indices = @transform_0, window_bounds = array<i64: 1, 8, 32>}, {transform_indices = @transform_1, window_bounds = array<i64: 1, 1, 8>}, {pipeline_mode = #tpu.pipeline_mode<synchronous>, transform_indices = @transform_2, window_bounds = array<i64: 2, 32, 16>}, {pipeline_mode = #tpu.pipeline_mode<synchronous>, transform_indices = @transform_3, window_bounds = array<i64: 2, 1, 16>}, {pipeline_mode = #tpu.pipeline_mode<synchronous>, transform_indices = @transform_4, window_bounds = array<i64: 2, 32, 16>}, {pipeline_mode = #tpu.pipeline_mode<synchronous>, transform_indices = @transform_5, window_bounds = array<i64: 2, 1, 16>}, {pipeline_mode = #tpu.pipeline_mode<synchronous>, transform_indices = @transform_6, window_bounds = array<i64: 2, 32, 16>}, {pipeline_mode = #tpu.pipeline_mode<synchronous>, transform_indices = @transform_7, window_bounds = array<i64: 2, 1, 16>}, {pipeline_mode = #tpu.pipeline_mode<synchronous>, transform_indices = @transform_8, window_bounds = array<i64: 2, 16, 32>}, {pipeline_mode = #tpu.pipeline_mode<synchronous>, transform_indices = @transform_9, window_bounds = array<i64: 1, 32>}, {pipeline_mode = #tpu.pipeline_mode<synchronous>, transform_indices = @transform_10, window_bounds = array<i64: 1, 32>}, {pipeline_mode = #tpu.pipeline_mode<synchronous>, transform_indices = @transform_11, window_bounds = array<i64: 1, 32>}, {pipeline_mode = #tpu.pipeline_mode<synchronous>, transform_indices = @transform_12, window_bounds = array<i64: 32, 64>}, {pipeline_mode = #tpu.pipeline_mode<synchronous>, transform_indices = @transform_13, window_bounds = array<i64: 1, 64>}, {pipeline_mode = #tpu.pipeline_mode<synchronous>, transform_indices = @transform_14, window_bounds = array<i64: 64, 32>}, {pipeline_mode = #tpu.pipeline_mode<synchronous>, transform_indices = @transform_15, window_bounds = array<i64: 1, 32>}, {pipeline_mode = #tpu.pipeline_mode<synchronous>, transform_indices = @transform_16, window_bounds = array<i64: 1, 32>}, {pipeline_mode = #tpu.pipeline_mode<synchronous>, transform_indices = @transform_17, window_bounds = array<i64: 1, 32>}, {transform_indices = @transform_18, window_bounds = array<i64: 1, 8, 32>}]} {
    %c0 = arith.constant 0 : index
    %c0_0 = arith.constant 0 : index
    %c0_1 = arith.constant 0 : index
    %0 = vector.load %arg1[%c0, %c0_0, %c0_1] : memref<1x8x32xf32, #tpu.memory_space<vmem>>, vector<1x8x32xf32>
    %1 = vector.shape_cast %0 : vector<1x8x32xf32> to vector<8x32xf32>
    %c0_2 = arith.constant 0 : index
    %c0_3 = arith.constant 0 : index
    %c0_4 = arith.constant 0 : index
    %2 = vector.load %arg2[%c0_2, %c0_3, %c0_4] : memref<1x1x8xf32, #tpu.memory_space<vmem>>, vector<1x1x8xf32>
    %3 = vector.shape_cast %2 : vector<1x1x8xf32> to vector<1x8xf32>
    %cst = arith.constant 0.000000e+00 : f32
    %4 = vector.broadcast %cst : f32 to vector<8x32xf32>
    %c0_5 = arith.constant 0 : index
    %c0_6 = arith.constant 0 : index
    %c0_7 = arith.constant 0 : index
    %5 = vector.load %arg3[%c0_5, %c0_6, %c0_7] : memref<2x32x16xf32, #tpu.memory_space<vmem>>, vector<1x32x16xf32>
    %6 = vector.shape_cast %5 : vector<1x32x16xf32> to vector<32x16xf32>
    %cst_8 = arith.constant dense<0.000000e+00> : vector<8x16xf32>
    %7 = tpu.matmul %1, %6, %cst_8 {dimension_numbers = #tpu.dot_dimension_numbers<[1], [0], [0], [1], [0, 0, 1, 1], [], []>} : vector<8x32xf32>, vector<32x16xf32>, vector<8x16xf32> -> vector<8x16xf32>
    %c0_9 = arith.constant 0 : index
    %c0_10 = arith.constant 0 : index
    %c0_11 = arith.constant 0 : index
    %8 = vector.load %arg4[%c0_9, %c0_10, %c0_11] : memref<2x1x16xf32, #tpu.memory_space<vmem>>, vector<1x1x16xf32>
    %9 = vector.shape_cast %8 : vector<1x1x16xf32> to vector<1x16xf32>
    %10 = vector.broadcast %9 : vector<1x16xf32> to vector<8x16xf32>
    %11 = arith.addf %7, %10 : vector<8x16xf32>
    %c0_12 = arith.constant 0 : index
    %c0_13 = arith.constant 0 : index
    %c0_14 = arith.constant 0 : index
    %12 = vector.load %arg5[%c0_12, %c0_13, %c0_14] : memref<2x32x16xf32, #tpu.memory_space<vmem>>, vector<1x32x16xf32>
    %13 = vector.shape_cast %12 : vector<1x32x16xf32> to vector<32x16xf32>
    %cst_15 = arith.constant dense<0.000000e+00> : vector<8x16xf32>
    %14 = tpu.matmul %1, %13, %cst_15 {dimension_numbers = #tpu.dot_dimension_numbers<[1], [0], [0], [1], [0, 0, 1, 1], [], []>} : vector<8x32xf32>, vector<32x16xf32>, vector<8x16xf32> -> vector<8x16xf32>
    %c0_16 = arith.constant 0 : index
    %c0_17 = arith.constant 0 : index
    %c0_18 = arith.constant 0 : index
    %15 = vector.load %arg6[%c0_16, %c0_17, %c0_18] : memref<2x1x16xf32, #tpu.memory_space<vmem>>, vector<1x1x16xf32>
    %16 = vector.shape_cast %15 : vector<1x1x16xf32> to vector<1x16xf32>
    %17 = vector.broadcast %16 : vector<1x16xf32> to vector<8x16xf32>
    %18 = arith.addf %14, %17 : vector<8x16xf32>
    %c0_19 = arith.constant 0 : index
    %c0_20 = arith.constant 0 : index
    %c0_21 = arith.constant 0 : index
    %19 = vector.load %arg7[%c0_19, %c0_20, %c0_21] : memref<2x32x16xf32, #tpu.memory_space<vmem>>, vector<1x32x16xf32>
    %20 = vector.shape_cast %19 : vector<1x32x16xf32> to vector<32x16xf32>
    %cst_22 = arith.constant dense<0.000000e+00> : vector<8x16xf32>
    %21 = tpu.matmul %1, %20, %cst_22 {dimension_numbers = #tpu.dot_dimension_numbers<[1], [0], [0], [1], [0, 0, 1, 1], [], []>} : vector<8x32xf32>, vector<32x16xf32>, vector<8x16xf32> -> vector<8x16xf32>
    %c0_23 = arith.constant 0 : index
    %c0_24 = arith.constant 0 : index
    %c0_25 = arith.constant 0 : index
    %22 = vector.load %arg8[%c0_23, %c0_24, %c0_25] : memref<2x1x16xf32, #tpu.memory_space<vmem>>, vector<1x1x16xf32>
    %23 = vector.shape_cast %22 : vector<1x1x16xf32> to vector<1x16xf32>
    %24 = vector.broadcast %23 : vector<1x16xf32> to vector<8x16xf32>
    %25 = arith.addf %21, %24 : vector<8x16xf32>
    %cst_26 = arith.constant dense<0.000000e+00> : vector<8x8xf32>
    %26 = tpu.matmul %11, %18, %cst_26 {dimension_numbers = #tpu.dot_dimension_numbers<[1], [1], [0], [0], [0, 0, 1, 0], [], []>} : vector<8x16xf32>, vector<8x16xf32>, vector<8x8xf32> -> vector<8x8xf32>
    %cst_27 = arith.constant 2.500000e-01 : f32
    %27 = vector.broadcast %cst_27 : f32 to vector<8x8xf32>
    %28 = arith.mulf %26, %27 : vector<8x8xf32>
    %29 = vector.broadcast %3 : vector<1x8xf32> to vector<8x8xf32>
    %30 = arith.addf %28, %29 : vector<8x8xf32>
    %cst_28 = arith.constant dense<0xFF800000> : vector<8xf32>
    %31 = vector.multi_reduction <maximumf>, %30, %cst_28 [1] : vector<8x8xf32> to vector<8xf32>
    %32 = vector.shape_cast %31 : vector<8xf32> to vector<8x1xf32>
    %33 = vector.broadcast %32 : vector<8x1xf32> to vector<8x8xf32>
    %34 = arith.subf %30, %33 : vector<8x8xf32>
    %35 = math.exp %34 : vector<8x8xf32>
    %cst_29 = arith.constant dense<0.000000e+00> : vector<8xf32>
    %36 = vector.multi_reduction <add>, %35, %cst_29 [1] : vector<8x8xf32> to vector<8xf32>
    %37 = vector.shape_cast %36 : vector<8xf32> to vector<8x1xf32>
    %38 = tpu.reciprocal %37 {approx = true} : vector<8x1xf32> -> vector<8x1xf32>
    %39 = vector.broadcast %38 : vector<8x1xf32> to vector<8x8xf32>
    %40 = arith.mulf %35, %39 : vector<8x8xf32>
    %cst_30 = arith.constant dense<0.000000e+00> : vector<8x16xf32>
    %41 = tpu.matmul %40, %25, %cst_30 {dimension_numbers = #tpu.dot_dimension_numbers<[1], [0], [0], [1], [0, 0, 1, 1], [], []>} : vector<8x8xf32>, vector<8x16xf32>, vector<8x16xf32> -> vector<8x16xf32>
    %c0_31 = arith.constant 0 : index
    %c0_32 = arith.constant 0 : index
    %c0_33 = arith.constant 0 : index
    %42 = vector.load %arg9[%c0_31, %c0_32, %c0_33] : memref<2x16x32xf32, #tpu.memory_space<vmem>>, vector<1x16x32xf32>
    %43 = vector.shape_cast %42 : vector<1x16x32xf32> to vector<16x32xf32>
    %cst_34 = arith.constant dense<0.000000e+00> : vector<8x32xf32>
    %44 = tpu.matmul %41, %43, %cst_34 {dimension_numbers = #tpu.dot_dimension_numbers<[1], [0], [0], [1], [0, 0, 1, 1], [], []>} : vector<8x16xf32>, vector<16x32xf32>, vector<8x32xf32> -> vector<8x32xf32>
    %45 = arith.addf %4, %44 : vector<8x32xf32>
    %c1 = arith.constant 1 : index
    %c0_35 = arith.constant 0 : index
    %c0_36 = arith.constant 0 : index
    %46 = vector.load %arg3[%c1, %c0_35, %c0_36] : memref<2x32x16xf32, #tpu.memory_space<vmem>>, vector<1x32x16xf32>
    %47 = vector.shape_cast %46 : vector<1x32x16xf32> to vector<32x16xf32>
    %cst_37 = arith.constant dense<0.000000e+00> : vector<8x16xf32>
    %48 = tpu.matmul %1, %47, %cst_37 {dimension_numbers = #tpu.dot_dimension_numbers<[1], [0], [0], [1], [0, 0, 1, 1], [], []>} : vector<8x32xf32>, vector<32x16xf32>, vector<8x16xf32> -> vector<8x16xf32>
    %c1_38 = arith.constant 1 : index
    %c0_39 = arith.constant 0 : index
    %c0_40 = arith.constant 0 : index
    %49 = vector.load %arg4[%c1_38, %c0_39, %c0_40] : memref<2x1x16xf32, #tpu.memory_space<vmem>>, vector<1x1x16xf32>
    %50 = vector.shape_cast %49 : vector<1x1x16xf32> to vector<1x16xf32>
    %51 = vector.broadcast %50 : vector<1x16xf32> to vector<8x16xf32>
    %52 = arith.addf %48, %51 : vector<8x16xf32>
    %c1_41 = arith.constant 1 : index
    %c0_42 = arith.constant 0 : index
    %c0_43 = arith.constant 0 : index
    %53 = vector.load %arg5[%c1_41, %c0_42, %c0_43] : memref<2x32x16xf32, #tpu.memory_space<vmem>>, vector<1x32x16xf32>
    %54 = vector.shape_cast %53 : vector<1x32x16xf32> to vector<32x16xf32>
    %cst_44 = arith.constant dense<0.000000e+00> : vector<8x16xf32>
    %55 = tpu.matmul %1, %54, %cst_44 {dimension_numbers = #tpu.dot_dimension_numbers<[1], [0], [0], [1], [0, 0, 1, 1], [], []>} : vector<8x32xf32>, vector<32x16xf32>, vector<8x16xf32> -> vector<8x16xf32>
    %c1_45 = arith.constant 1 : index
    %c0_46 = arith.constant 0 : index
    %c0_47 = arith.constant 0 : index
    %56 = vector.load %arg6[%c1_45, %c0_46, %c0_47] : memref<2x1x16xf32, #tpu.memory_space<vmem>>, vector<1x1x16xf32>
    %57 = vector.shape_cast %56 : vector<1x1x16xf32> to vector<1x16xf32>
    %58 = vector.broadcast %57 : vector<1x16xf32> to vector<8x16xf32>
    %59 = arith.addf %55, %58 : vector<8x16xf32>
    %c1_48 = arith.constant 1 : index
    %c0_49 = arith.constant 0 : index
    %c0_50 = arith.constant 0 : index
    %60 = vector.load %arg7[%c1_48, %c0_49, %c0_50] : memref<2x32x16xf32, #tpu.memory_space<vmem>>, vector<1x32x16xf32>
    %61 = vector.shape_cast %60 : vector<1x32x16xf32> to vector<32x16xf32>
    %cst_51 = arith.constant dense<0.000000e+00> : vector<8x16xf32>
    %62 = tpu.matmul %1, %61, %cst_51 {dimension_numbers = #tpu.dot_dimension_numbers<[1], [0], [0], [1], [0, 0, 1, 1], [], []>} : vector<8x32xf32>, vector<32x16xf32>, vector<8x16xf32> -> vector<8x16xf32>
    %c1_52 = arith.constant 1 : index
    %c0_53 = arith.constant 0 : index
    %c0_54 = arith.constant 0 : index
    %63 = vector.load %arg8[%c1_52, %c0_53, %c0_54] : memref<2x1x16xf32, #tpu.memory_space<vmem>>, vector<1x1x16xf32>
    %64 = vector.shape_cast %63 : vector<1x1x16xf32> to vector<1x16xf32>
    %65 = vector.broadcast %64 : vector<1x16xf32> to vector<8x16xf32>
    %66 = arith.addf %62, %65 : vector<8x16xf32>
    %cst_55 = arith.constant dense<0.000000e+00> : vector<8x8xf32>
    %67 = tpu.matmul %52, %59, %cst_55 {dimension_numbers = #tpu.dot_dimension_numbers<[1], [1], [0], [0], [0, 0, 1, 0], [], []>} : vector<8x16xf32>, vector<8x16xf32>, vector<8x8xf32> -> vector<8x8xf32>
    %cst_56 = arith.constant 2.500000e-01 : f32
    %68 = vector.broadcast %cst_56 : f32 to vector<8x8xf32>
    %69 = arith.mulf %67, %68 : vector<8x8xf32>
    %70 = vector.broadcast %3 : vector<1x8xf32> to vector<8x8xf32>
    %71 = arith.addf %69, %70 : vector<8x8xf32>
    %cst_57 = arith.constant dense<0xFF800000> : vector<8xf32>
    %72 = vector.multi_reduction <maximumf>, %71, %cst_57 [1] : vector<8x8xf32> to vector<8xf32>
    %73 = vector.shape_cast %72 : vector<8xf32> to vector<8x1xf32>
    %74 = vector.broadcast %73 : vector<8x1xf32> to vector<8x8xf32>
    %75 = arith.subf %71, %74 : vector<8x8xf32>
    %76 = math.exp %75 : vector<8x8xf32>
    %cst_58 = arith.constant dense<0.000000e+00> : vector<8xf32>
    %77 = vector.multi_reduction <add>, %76, %cst_58 [1] : vector<8x8xf32> to vector<8xf32>
    %78 = vector.shape_cast %77 : vector<8xf32> to vector<8x1xf32>
    %79 = tpu.reciprocal %78 {approx = true} : vector<8x1xf32> -> vector<8x1xf32>
    %80 = vector.broadcast %79 : vector<8x1xf32> to vector<8x8xf32>
    %81 = arith.mulf %76, %80 : vector<8x8xf32>
    %cst_59 = arith.constant dense<0.000000e+00> : vector<8x16xf32>
    %82 = tpu.matmul %81, %66, %cst_59 {dimension_numbers = #tpu.dot_dimension_numbers<[1], [0], [0], [1], [0, 0, 1, 1], [], []>} : vector<8x8xf32>, vector<8x16xf32>, vector<8x16xf32> -> vector<8x16xf32>
    %c1_60 = arith.constant 1 : index
    %c0_61 = arith.constant 0 : index
    %c0_62 = arith.constant 0 : index
    %83 = vector.load %arg9[%c1_60, %c0_61, %c0_62] : memref<2x16x32xf32, #tpu.memory_space<vmem>>, vector<1x16x32xf32>
    %84 = vector.shape_cast %83 : vector<1x16x32xf32> to vector<16x32xf32>
    %cst_63 = arith.constant dense<0.000000e+00> : vector<8x32xf32>
    %85 = tpu.matmul %82, %84, %cst_63 {dimension_numbers = #tpu.dot_dimension_numbers<[1], [0], [0], [1], [0, 0, 1, 1], [], []>} : vector<8x16xf32>, vector<16x32xf32>, vector<8x32xf32> -> vector<8x32xf32>
    %86 = arith.addf %45, %85 : vector<8x32xf32>
    %c0_64 = arith.constant 0 : index
    %c0_65 = arith.constant 0 : index
    %87 = vector.load %arg10[%c0_64, %c0_65] : memref<1x32xf32, #tpu.memory_space<vmem>>, vector<1x32xf32>
    %88 = vector.broadcast %87 : vector<1x32xf32> to vector<8x32xf32>
    %89 = arith.addf %86, %88 : vector<8x32xf32>
    %90 = arith.addf %89, %1 : vector<8x32xf32>
    %cst_66 = arith.constant dense<0.000000e+00> : vector<8xf32>
    %91 = vector.multi_reduction <add>, %90, %cst_66 [1] : vector<8x32xf32> to vector<8xf32>
    %92 = vector.shape_cast %91 : vector<8xf32> to vector<8x1xf32>
    %cst_67 = arith.constant 3.200000e+01 : f32
    %93 = vector.broadcast %cst_67 : f32 to vector<8x1xf32>
    %94 = arith.divf %92, %93 : vector<8x1xf32>
    %95 = vector.broadcast %94 : vector<8x1xf32> to vector<8x32xf32>
    %96 = arith.subf %90, %95 : vector<8x32xf32>
    %97 = arith.mulf %96, %96 : vector<8x32xf32>
    %cst_68 = arith.constant dense<0.000000e+00> : vector<8xf32>
    %98 = vector.multi_reduction <add>, %97, %cst_68 [1] : vector<8x32xf32> to vector<8xf32>
    %99 = vector.shape_cast %98 : vector<8xf32> to vector<8x1xf32>
    %cst_69 = arith.constant 3.200000e+01 : f32
    %100 = vector.broadcast %cst_69 : f32 to vector<8x1xf32>
    %101 = arith.divf %99, %100 : vector<8x1xf32>
    %102 = vector.broadcast %94 : vector<8x1xf32> to vector<8x32xf32>
    %103 = arith.subf %90, %102 : vector<8x32xf32>
    %cst_70 = arith.constant 9.99999996E-13 : f32
    %104 = vector.broadcast %cst_70 : f32 to vector<8x1xf32>
    %105 = arith.addf %101, %104 : vector<8x1xf32>
    %106 = math.rsqrt %105 : vector<8x1xf32>
    %107 = vector.broadcast %106 : vector<8x1xf32> to vector<8x32xf32>
    %108 = arith.mulf %103, %107 : vector<8x32xf32>
    %c0_71 = arith.constant 0 : index
    %c0_72 = arith.constant 0 : index
    %109 = vector.load %arg11[%c0_71, %c0_72] : memref<1x32xf32, #tpu.memory_space<vmem>>, vector<1x32xf32>
    %110 = vector.broadcast %109 : vector<1x32xf32> to vector<8x32xf32>
    %111 = arith.mulf %108, %110 : vector<8x32xf32>
    %c0_73 = arith.constant 0 : index
    %c0_74 = arith.constant 0 : index
    %112 = vector.load %arg12[%c0_73, %c0_74] : memref<1x32xf32, #tpu.memory_space<vmem>>, vector<1x32xf32>
    %113 = vector.broadcast %112 : vector<1x32xf32> to vector<8x32xf32>
    %114 = arith.addf %111, %113 : vector<8x32xf32>
    %c0_75 = arith.constant 0 : index
    %c0_76 = arith.constant 0 : index
    %115 = vector.load %arg13[%c0_75, %c0_76] : memref<32x64xf32, #tpu.memory_space<vmem>>, vector<32x64xf32>
    %cst_77 = arith.constant dense<0.000000e+00> : vector<8x64xf32>
    %116 = tpu.matmul %114, %115, %cst_77 {dimension_numbers = #tpu.dot_dimension_numbers<[1], [0], [0], [1], [0, 0, 1, 1], [], []>} : vector<8x32xf32>, vector<32x64xf32>, vector<8x64xf32> -> vector<8x64xf32>
    %c0_78 = arith.constant 0 : index
    %c0_79 = arith.constant 0 : index
    %117 = vector.load %arg14[%c0_78, %c0_79] : memref<1x64xf32, #tpu.memory_space<vmem>>, vector<1x64xf32>
    %118 = vector.broadcast %117 : vector<1x64xf32> to vector<8x64xf32>
    %119 = arith.addf %116, %118 : vector<8x64xf32>
    %cst_80 = arith.constant 5.000000e-01 : f32
    %120 = vector.broadcast %cst_80 : f32 to vector<8x64xf32>
    %121 = arith.mulf %120, %119 : vector<8x64xf32>
    %cst_81 = arith.constant 0.707106769 : f32
    %122 = vector.broadcast %cst_81 : f32 to vector<8x64xf32>
    %123 = arith.mulf %119, %122 : vector<8x64xf32>
    %124 = math.erf %123 : vector<8x64xf32>
    %cst_82 = arith.constant 1.000000e+00 : f32
    %125 = vector.broadcast %cst_82 : f32 to vector<8x64xf32>
    %126 = arith.addf %125, %124 : vector<8x64xf32>
    %127 = arith.mulf %121, %126 : vector<8x64xf32>
    %c0_83 = arith.constant 0 : index
    %c0_84 = arith.constant 0 : index
    %128 = vector.load %arg15[%c0_83, %c0_84] : memref<64x32xf32, #tpu.memory_space<vmem>>, vector<64x32xf32>
    %cst_85 = arith.constant dense<0.000000e+00> : vector<8x32xf32>
    %129 = tpu.matmul %127, %128, %cst_85 {dimension_numbers = #tpu.dot_dimension_numbers<[1], [0], [0], [1], [0, 0, 1, 1], [], []>} : vector<8x64xf32>, vector<64x32xf32>, vector<8x32xf32> -> vector<8x32xf32>
    %c0_86 = arith.constant 0 : index
    %c0_87 = arith.constant 0 : index
    %130 = vector.load %arg16[%c0_86, %c0_87] : memref<1x32xf32, #tpu.memory_space<vmem>>, vector<1x32xf32>
    %131 = vector.broadcast %130 : vector<1x32xf32> to vector<8x32xf32>
    %132 = arith.addf %129, %131 : vector<8x32xf32>
    %133 = arith.addf %132, %114 : vector<8x32xf32>
    %cst_88 = arith.constant dense<0.000000e+00> : vector<8xf32>
    %134 = vector.multi_reduction <add>, %133, %cst_88 [1] : vector<8x32xf32> to vector<8xf32>
    %135 = vector.shape_cast %134 : vector<8xf32> to vector<8x1xf32>
    %cst_89 = arith.constant 3.200000e+01 : f32
    %136 = vector.broadcast %cst_89 : f32 to vector<8x1xf32>
    %137 = arith.divf %135, %136 : vector<8x1xf32>
    %138 = vector.broadcast %137 : vector<8x1xf32> to vector<8x32xf32>
    %139 = arith.subf %133, %138 : vector<8x32xf32>
    %140 = arith.mulf %139, %139 : vector<8x32xf32>
    %cst_90 = arith.constant dense<0.000000e+00> : vector<8xf32>
    %141 = vector.multi_reduction <add>, %140, %cst_90 [1] : vector<8x32xf32> to vector<8xf32>
    %142 = vector.shape_cast %141 : vector<8xf32> to vector<8x1xf32>
    %cst_91 = arith.constant 3.200000e+01 : f32
    %143 = vector.broadcast %cst_91 : f32 to vector<8x1xf32>
    %144 = arith.divf %142, %143 : vector<8x1xf32>
    %145 = vector.broadcast %137 : vector<8x1xf32> to vector<8x32xf32>
    %146 = arith.subf %133, %145 : vector<8x32xf32>
    %cst_92 = arith.constant 9.99999996E-13 : f32
    %147 = vector.broadcast %cst_92 : f32 to vector<8x1xf32>
    %148 = arith.addf %144, %147 : vector<8x1xf32>
    %149 = math.rsqrt %148 : vector<8x1xf32>
    %150 = vector.broadcast %149 : vector<8x1xf32> to vector<8x32xf32>
    %151 = arith.mulf %146, %150 : vector<8x32xf32>
    %c0_93 = arith.constant 0 : index
    %c0_94 = arith.constant 0 : index
    %152 = vector.load %arg17[%c0_93, %c0_94] : memref<1x32xf32, #tpu.memory_space<vmem>>, vector<1x32xf32>
    %153 = vector.broadcast %152 : vector<1x32xf32> to vector<8x32xf32>
    %154 = arith.mulf %151, %153 : vector<8x32xf32>
    %c0_95 = arith.constant 0 : index
    %c0_96 = arith.constant 0 : index
    %155 = vector.load %arg18[%c0_95, %c0_96] : memref<1x32xf32, #tpu.memory_space<vmem>>, vector<1x32xf32>
    %156 = vector.broadcast %155 : vector<1x32xf32> to vector<8x32xf32>
    %157 = arith.addf %154, %156 : vector<8x32xf32>
    %c0_97 = arith.constant 0 : index
    %c0_98 = arith.constant 0 : index
    %c0_99 = arith.constant 0 : index
    %158 = vector.load %arg19[%c0_97, %c0_98, %c0_99] : memref<1x8x32xf32, #tpu.memory_space<vmem>>, vector<1x8x32xf32>
    %159 = vector.shape_cast %158 : vector<1x8x32xf32> to vector<8x32xf32>
    %160 = vector.shape_cast %157 : vector<8x32xf32> to vector<1x8x32xf32>
    tpu.vector_store %arg19[%c0_97, %c0_98, %c0_99], %160 {strides = array<i32>} : memref<1x8x32xf32, #tpu.memory_space<vmem>>, vector<1x8x32xf32>,
    return
  }
  func.func @transform_0(%arg0: i32) -> (i32, i32, i32) {
    %c0_i32 = arith.constant 0 : i32
    %c0_i32_0 = arith.constant 0 : i32
    %c0_i32_1 = arith.constant 0 : i32
    return %arg0, %c0_i32, %c0_i32_0 : i32, i32, i32
  }
  func.func @transform_1(%arg0: i32) -> (i32, i32, i32) {
    %c0_i32 = arith.constant 0 : i32
    %c0_i32_0 = arith.constant 0 : i32
    %c0_i32_1 = arith.constant 0 : i32
    return %arg0, %c0_i32, %c0_i32_0 : i32, i32, i32
  }
  func.func @transform_2(%arg0: i32) -> (i32, i32, i32) {
    %c0_i32 = arith.constant 0 : i32
    %c0_i32_0 = arith.constant 0 : i32
    %c0_i32_1 = arith.constant 0 : i32
    %c0_i32_2 = arith.constant 0 : i32
    return %c0_i32, %c0_i32_0, %c0_i32_1 : i32, i32, i32
  }
  func.func @transform_3(%arg0: i32) -> (i32, i32, i32) {
    %c0_i32 = arith.constant 0 : i32
    %c0_i32_0 = arith.constant 0 : i32
    %c0_i32_1 = arith.constant 0 : i32
    %c0_i32_2 = arith.constant 0 : i32
    return %c0_i32, %c0_i32_0, %c0_i32_1 : i32, i32, i32
  }
  func.func @transform_4(%arg0: i32) -> (i32, i32, i32) {
    %c0_i32 = arith.constant 0 : i32
    %c0_i32_0 = arith.constant 0 : i32
    %c0_i32_1 = arith.constant 0 : i32
    %c0_i32_2 = arith.constant 0 : i32
    return %c0_i32, %c0_i32_0, %c0_i32_1 : i32, i32, i32
  }
  func.func @transform_5(%arg0: i32) -> (i32, i32, i32) {
    %c0_i32 = arith.constant 0 : i32
    %c0_i32_0 = arith.constant 0 : i32
    %c0_i32_1 = arith.constant 0 : i32
    %c0_i32_2 = arith.constant 0 : i32
    return %c0_i32, %c0_i32_0, %c0_i32_1 : i32, i32, i32
  }
  func.func @transform_6(%arg0: i32) -> (i32, i32, i32) {
    %c0_i32 = arith.constant 0 : i32
    %c0_i32_0 = arith.constant 0 : i32
    %c0_i32_1 = arith.constant 0 : i32
    %c0_i32_2 = arith.constant 0 : i32
    return %c0_i32, %c0_i32_0, %c0_i32_1 : i32, i32, i32
  }
  func.func @transform_7(%arg0: i32) -> (i32, i32, i32) {
    %c0_i32 = arith.constant 0 : i32
    %c0_i32_0 = arith.constant 0 : i32
    %c0_i32_1 = arith.constant 0 : i32
    %c0_i32_2 = arith.constant 0 : i32
    return %c0_i32, %c0_i32_0, %c0_i32_1 : i32, i32, i32
  }
  func.func @transform_8(%arg0: i32) -> (i32, i32, i32) {
    %c0_i32 = arith.constant 0 : i32
    %c0_i32_0 = arith.constant 0 : i32
    %c0_i32_1 = arith.constant 0 : i32
    %c0_i32_2 = arith.constant 0 : i32
    return %c0_i32, %c0_i32_0, %c0_i32_1 : i32, i32, i32
  }
  func.func @transform_9(%arg0: i32) -> (i32, i32) {
    %c0_i32 = arith.constant 0 : i32
    %c0_i32_0 = arith.constant 0 : i32
    %c0_i32_1 = arith.constant 0 : i32
    return %c0_i32, %c0_i32_0 : i32, i32
  }
  func.func @transform_10(%arg0: i32) -> (i32, i32) {
    %c0_i32 = arith.constant 0 : i32
    %c0_i32_0 = arith.constant 0 : i32
    %c0_i32_1 = arith.constant 0 : i32
    return %c0_i32, %c0_i32_0 : i32, i32
  }
  func.func @transform_11(%arg0: i32) -> (i32, i32) {
    %c0_i32 = arith.constant 0 : i32
    %c0_i32_0 = arith.constant 0 : i32
    %c0_i32_1 = arith.constant 0 : i32
    return %c0_i32, %c0_i32_0 : i32, i32
  }
  func.func @transform_12(%arg0: i32) -> (i32, i32) {
    %c0_i32 = arith.constant 0 : i32
    %c0_i32_0 = arith.constant 0 : i32
    %c0_i32_1 = arith.constant 0 : i32
    return %c0_i32, %c0_i32_0 : i32, i32
  }
  func.func @transform_13(%arg0: i32) -> (i32, i32) {
    %c0_i32 = arith.constant 0 : i32
    %c0_i32_0 = arith.constant 0 : i32
    %c0_i32_1 = arith.constant 0 : i32
    return %c0_i32, %c0_i32_0 : i32, i32
  }
  func.func @transform_14(%arg0: i32) -> (i32, i32) {
    %c0_i32 = arith.constant 0 : i32
    %c0_i32_0 = arith.constant 0 : i32
    %c0_i32_1 = arith.constant 0 : i32
    return %c0_i32, %c0_i32_0 : i32, i32
  }
  func.func @transform_15(%arg0: i32) -> (i32, i32) {
    %c0_i32 = arith.constant 0 : i32
    %c0_i32_0 = arith.constant 0 : i32
    %c0_i32_1 = arith.constant 0 : i32
    return %c0_i32, %c0_i32_0 : i32, i32
  }
  func.func @transform_16(%arg0: i32) -> (i32, i32) {
    %c0_i32 = arith.constant 0 : i32
    %c0_i32_0 = arith.constant 0 : i32
    %c0_i32_1 = arith.constant 0 : i32
    return %c0_i32, %c0_i32_0 : i32, i32
  }
  func.func @transform_17(%arg0: i32) -> (i32, i32) {
    %c0_i32 = arith.constant 0 : i32
    %c0_i32_0 = arith.constant 0 : i32
    %c0_i32_1 = arith.constant 0 : i32
    return %c0_i32, %c0_i32_0 : i32, i32
  }
  func.func @transform_18(%arg0: i32) -> (i32, i32, i32) {
    %c0_i32 = arith.constant 0 : i32
    %c0_i32_0 = arith.constant 0 : i32
    %c0_i32_1 = arith.constant 0 : i32
    return %arg0, %c0_i32, %c0_i32_0 : i32, i32, i32
  }
}

</mosaic_0001>

<llo_original>
// kernel: bert_mixup_forward.3
$region0: #{bert_mixup_forward.3}
  #allocation0 [shape = 'u32[]', space=smem, size = 0x4, offset = 0x4, fixed_abs, tag = 'smem constant byte address 0x4 - core index']
  #allocation1 [shape = 'u32[144,128]{1,0:T(1,128)}', space=vmem, size = 0x12000, scoped, tag = 'internal scratch']
  %s0 = inlined_call_operand.vmem [shape: f32[2,8,32], index: 0, kind: input, shape index: {}]
  %s1 = inlined_call_operand.vmem [shape: f32[8,32], index: 1, kind: input, shape index: {}]
  %s2 = inlined_call_operand.vmem [shape: f32[1,32], index: 2, kind: input, shape index: {}]
  %s3 = inlined_call_operand.vmem [shape: f32[1,32], index: 3, kind: input, shape index: {}]
  %s4 = inlined_call_operand.vmem [shape: f32[1,32], index: 4, kind: input, shape index: {}]
  %s5 = inlined_call_operand.vmem [shape: f32[2,8,32], index: 5, kind: output, shape index: {}]
  %s6 = sld [smem:[#allocation0]]
  $region53: #{bert_mixup_forward.3} parent=0
    _
  %s8 = ssub.s32 1, %s6
  %s9 = scalar_select 0, %s8, %s6
  loop: start=0, step=1, limit=4
  $region2: #{bert_mixup_forward.3} parent=0 // loop_pre_header
    _
  $region3: #{bert_mixup_forward.3} parent=0 // loop_header
    %s11 = sphi 0, %s15
    %p12 = scmp.ge.s32.totalorder %s11, 4
    %s21 = sphi 0, %s23
    %s24 = sphi 0, %s21
    %s25 = sphi 0, %s24
    %s41 = sphi 0, %s25
    %s45 = sphi 0, %s45
    %s47 = sphi 0, %s45
    %s48 = sphi 0, %s47
    %s62 = sphi 0, %s48
    %s66 = sphi 0, %s66
    %s68 = sphi 0, %s66
    %s69 = sphi 0, %s68
    %s83 = sphi 0, %s69
    %s87 = sphi 0, %s87
    %s89 = sphi 0, %s87
    %s90 = sphi 0, %s89
    %s104 = sphi 0, %s90
    %s108 = sphi 0, %s108
    %s110 = sphi 0, %s108
    %s111 = sphi 0, %s110
    %s125 = sphi 0, %s111
    %s131 = sphi 0, %s133
    %s134 = sphi 0, %s131
    %s135 = sphi 0, %s134
    %s151 = sphi 0, %s135
  $region4: #{bert_mixup_forward.3} parent=0 // loop_header_branch
    %14 = sbr.rel (%p12) target = $region8
  $region5: #{bert_mixup_forward.3} parent=0 // loop_body
    %s16 = ssub.s32 %s11, 1
    %s17 = ssub.s32 %s11, 2
    %s18 = sadd.s32 %s11, 1
    %s19 = ssub.s32 %s11, %s18
    %p20 = scmp.eq.s32.totalorder %s19, 0
    %s22 = sadd.s32 %s21, 1
    %s23 = scalar_select %p20, %s21, %s22
    %p26 = pneg %p20
    %p27 = scmp.eq.s32.totalorder %s11, 1
    %p28 = por %p26, %p27
    %p29 = scmp.ne.s32.totalorder %s21, %s24
    %p30 = scmp.eq.s32.totalorder %s11, 0
    %p31 = por %p29, %p30
    %p32 = scmp.ne.s32.totalorder %s21, %s24
    %p33 = scmp.eq.s32.totalorder %s16, 1
    %p34 = por %p32, %p33
    %p35 = scmp.ne.s32.totalorder %s24, %s25
    %p36 = scmp.eq.s32.totalorder %s16, 0
    %p37 = por %p35, %p36
    %p38 = scmp.ne.s32.totalorder %s24, %s25
    %p39 = scmp.eq.s32.totalorder %s17, 1
    %p40 = por %p38, %p39
    %p42 = scmp.ne.s32.totalorder %s25, %s41
    %p43 = scmp.eq.s32.totalorder %s17, 0
    %p44 = por %p42, %p43
    %s46 = sadd.s32 %s45, 1
    %p49 = scmp.eq.s32.totalorder %s11, 1
    %p50 = scmp.ne.s32.totalorder %s45, %s47
    %p51 = scmp.eq.s32.totalorder %s11, 0
    %p52 = por %p50, %p51
    %p53 = scmp.ne.s32.totalorder %s45, %s47
    %p54 = scmp.eq.s32.totalorder %s16, 1
    %p55 = por %p53, %p54
    %p56 = scmp.ne.s32.totalorder %s47, %s48
    %p57 = scmp.eq.s32.totalorder %s16, 0
    %p58 = por %p56, %p57
    %p59 = scmp.ne.s32.totalorder %s47, %s48
    %p60 = scmp.eq.s32.totalorder %s17, 1
    %p61 = por %p59, %p60
    %p63 = scmp.ne.s32.totalorder %s48, %s62
    %p64 = scmp.eq.s32.totalorder %s17, 0
    %p65 = por %p63, %p64
    %s67 = sadd.s32 %s66, 1
    %p70 = scmp.eq.s32.totalorder %s11, 1
    %p71 = scmp.ne.s32.totalorder %s66, %s68
    %p72 = scmp.eq.s32.totalorder %s11, 0
    %p73 = por %p71, %p72
    %p74 = scmp.ne.s32.totalorder %s66, %s68
    %p75 = scmp.eq.s32.totalorder %s16, 1
    %p76 = por %p74, %p75
    %p77 = scmp.ne.s32.totalorder %s68, %s69
    %p78 = scmp.eq.s32.totalorder %s16, 0
    %p79 = por %p77, %p78
    %p80 = scmp.ne.s32.totalorder %s68, %s69
    %p81 = scmp.eq.s32.totalorder %s17, 1
    %p82 = por %p80, %p81
    %p84 = scmp.ne.s32.totalorder %s69, %s83
    %p85 = scmp.eq.s32.totalorder %s17, 0
    %p86 = por %p84, %p85
    %s88 = sadd.s32 %s87, 1
    %p91 = scmp.eq.s32.totalorder %s11, 1
    %p92 = scmp.ne.s32.totalorder %s87, %s89
    %p93 = scmp.eq.s32.totalorder %s11, 0
    %p94 = por %p92, %p93
    %p95 = scmp.ne.s32.totalorder %s87, %s89
    %p96 = scmp.eq.s32.totalorder %s16, 1
    %p97 = por %p95, %p96
    %p98 = scmp.ne.s32.totalorder %s89, %s90
    %p99 = scmp.eq.s32.totalorder %s16, 0
    %p100 = por %p98, %p99
    %p101 = scmp.ne.s32.totalorder %s89, %s90
    %p102 = scmp.eq.s32.totalorder %s17, 1
    %p103 = por %p101, %p102
    %p105 = scmp.ne.s32.totalorder %s90, %s104
    %p106 = scmp.eq.s32.totalorder %s17, 0
    %p107 = por %p105, %p106
    %s109 = sadd.s32 %s108, 1
    %p112 = scmp.eq.s32.totalorder %s11, 1
    %p113 = scmp.ne.s32.totalorder %s108, %s110
    %p114 = scmp.eq.s32.totalorder %s11, 0
    %p115 = por %p113, %p114
    %p116 = scmp.ne.s32.totalorder %s108, %s110
    %p117 = scmp.eq.s32.totalorder %s16, 1
    %p118 = por %p116, %p117
    %p119 = scmp.ne.s32.totalorder %s110, %s111
    %p120 = scmp.eq.s32.totalorder %s16, 0
    %p121 = por %p119, %p120
    %p122 = scmp.ne.s32.totalorder %s110, %s111
    %p123 = scmp.eq.s32.totalorder %s17, 1
    %p124 = por %p122, %p123
    %p126 = scmp.ne.s32.totalorder %s111, %s125
    %p127 = scmp.eq.s32.totalorder %s17, 0
    %p128 = por %p126, %p127
    %s129 = ssub.s32 %s11, %s18
    %p130 = scmp.eq.s32.totalorder %s129, 0
    %s132 = sadd.s32 %s131, 1
    %s133 = scalar_select %p130, %s131, %s132
    %p136 = pneg %p130
    %p137 = scmp.eq.s32.totalorder %s11, 1
    %p138 = por %p136, %p137
    %p139 = scmp.ne.s32.totalorder %s131, %s134
    %p140 = scmp.eq.s32.totalorder %s11, 0
    %p141 = por %p139, %p140
    %p142 = scmp.ne.s32.totalorder %s131, %s134
    %p143 = scmp.eq.s32.totalorder %s16, 1
    %p144 = por %p142, %p143
    %p145 = scmp.ne.s32.totalorder %s134, %s135
    %p146 = scmp.eq.s32.totalorder %s16, 0
    %p147 = por %p145, %p146
    %p148 = scmp.ne.s32.totalorder %s134, %s135
    %p149 = scmp.eq.s32.totalorder %s17, 1
    %p150 = por %p148, %p149
    %p152 = scmp.ne.s32.totalorder %s135, %s151
    %p153 = scmp.eq.s32.totalorder %s17, 0
    %p154 = por %p152, %p153
    %p155 = scmp.le.s32.totalorder 1, %s11
    %p156 = scmp.lt.s32.totalorder %s11, 3
    %p157 = pnand %p155, %p156
    %p158 = pneg %p157
    // Predicated region
    $region9: #{bert_mixup_forward.3} parent=5 // pred_check
      _
    $region10: #{bert_mixup_forward.3} parent=5 // pred_check_branch
      %160 = sbr.rel (%p157) target = $region12
    $region11: #{bert_mixup_forward.3} parent=5 // pred_region
      %s161 = ssub.s32 %s11, 1
      // Predicated region
      $region13: #{bert_mixup_forward.3} parent=11 // pred_check
        %p162 = pneg %p58
      $region14: #{bert_mixup_forward.3} parent=11 // pred_check_branch
        %164 = sbr.rel (%p162) target = $region16
      $region15: #{bert_mixup_forward.3} parent=11 // pred_region
        _
      $region16: #{bert_mixup_forward.3} parent=11 // pred_fallthru
        _
      // Predicated region
      $region17: #{bert_mixup_forward.3} parent=11 // pred_check
        %p165 = pneg %p79
      $region18: #{bert_mixup_forward.3} parent=11 // pred_check_branch
        %167 = sbr.rel (%p165) target = $region20
      $region19: #{bert_mixup_forward.3} parent=11 // pred_region
        _
      $region20: #{bert_mixup_forward.3} parent=11 // pred_fallthru
        _
      // Predicated region
      $region21: #{bert_mixup_forward.3} parent=11 // pred_check
        %p168 = pneg %p100
      $region22: #{bert_mixup_forward.3} parent=11 // pred_check_branch
        %170 = sbr.rel (%p168) target = $region24
      $region23: #{bert_mixup_forward.3} parent=11 // pred_region
        _
      $region24: #{bert_mixup_forward.3} parent=11 // pred_fallthru
        _
      // Predicated region
      $region25: #{bert_mixup_forward.3} parent=11 // pred_check
        %p171 = pneg %p121
      $region26: #{bert_mixup_forward.3} parent=11 // pred_check_branch
        %173 = sbr.rel (%p171) target = $region28
      $region27: #{bert_mixup_forward.3} parent=11 // pred_region
        _
      $region28: #{bert_mixup_forward.3} parent=11 // pred_fallthru
        _
    $region12: #{bert_mixup_forward.3} parent=5 // pred_fallthru
      _
    %p174 = scmp.lt.s32.totalorder %s11, 2
    // Predicated region
    $region29: #{bert_mixup_forward.3} parent=5 // pred_check
      %p175 = pneg %p174
    $region30: #{bert_mixup_forward.3} parent=5 // pred_check_branch
      %177 = sbr.rel (%p175) target = $region32
    $region31: #{bert_mixup_forward.3} parent=5 // pred_region
      // Predicated region
      $region33: #{bert_mixup_forward.3} parent=31 // pred_check
        %p178 = pneg %p31
      $region34: #{bert_mixup_forward.3} parent=31 // pred_check_branch
        %180 = sbr.rel (%p178) target = $region36
      $region35: #{bert_mixup_forward.3} parent=31 // pred_region
        %p181 = scmp.lt.s32.totalorder %s11, 1
        %s182 = scalar_select %p181, %s11, 1
        %s183 = smul.addr %s182, 8
        %s184 = scalar_lea.vmem %s0, %s183
      $region36: #{bert_mixup_forward.3} parent=31 // pred_fallthru
        _
    $region32: #{bert_mixup_forward.3} parent=5 // pred_fallthru
      _
    %p185 = scmp.le.s32.totalorder 1, %s11
    %p186 = scmp.lt.s32.totalorder %s11, 3
    %p187 = pnand %p185, %p186
    %p188 = pneg %p187
    // Predicated region
    $region37: #{bert_mixup_forward.3} parent=5 // pred_check
      _
    $region38: #{bert_mixup_forward.3} parent=5 // pred_check_branch
      %190 = sbr.rel (%p187) target = $region40
    $region39: #{bert_mixup_forward.3} parent=5 // pred_region
      %s191 = ssub.s32 %s11, 1
      %p192 = scmp.lt.s32.totalorder %s16, 1
      %s193 = scalar_select %p192, %s16, 1
      %s194 = smul.addr %s193, 8
      %s195 = scalar_lea.vmem %s0, %s194
      %p196 = pneg %p37
      %p197 = pneg %p34
      %p198 = pneg %p58
      %p199 = pneg %p55
      %p200 = pneg %p79
      %p201 = pneg %p76
      %p202 = pneg %p100
      %p203 = pneg %p97
      %p204 = pneg %p121
      %p205 = pneg %p118
      %p206 = pneg %p147
      %p207 = pneg %p144
      %p208 = scmp.lt.s32.totalorder %s16, 1
      %s209 = scalar_select %p208, %s16, 1
      %s210 = smul.addr %s209, 8
      %s211 = scalar_lea.vmem %s5, %s210
      %p212 = scmp.lt.s32.totalorder %s16, 1
      %s213 = scalar_select %p212, %s16, 1
      %s214 = smul.addr %s213, 8
      %s215 = scalar_lea.vmem %s0, %s214
      %p216 = scmp.lt.s32.totalorder %s16, 1
      %s217 = scalar_select %p216, %s16, 1
      %s218 = smul.addr %s217, 8
      %s219 = scalar_lea.vmem %s5, %s218
      %v220 = vld [vmem:[%s215] sm:$0xff]
      %v221 = vld [vmem:[%s1] sm:$0xff]
      %v222 = vadd.f32 %v220, %v221
      %v223 = vld [vmem:[%s2] sm:$0x1]
      %v225 = vlaneseq
      %v226 = vshrl.u32 %v225, 7
      %v227 = vsub.s32 0, %v226
      %v228 = vrot.slane %v223, %v227
      %v230 = vadd.f32 %v222, %v228
      %vm231 = vcmask 261120
      %v232 = vsel %vm231, %v230, 0.0
      %233 = vadd.xlane.f32.xlu0 %v232
      %v234 = vpop.xlane.xlu0 %233
      %v235 = vrcp.pop 32.0
      %v236 = vmul.f32 %v234, %v235
      %v237 = vsub.f32 %v230, %v236
      %v238 = vmul.f32 %v237, %v237
      %v239 = vsel %vm231, %v238, 0.0
      %240 = vadd.xlane.f32.xlu0 %v239
      %v241 = vpop.xlane.xlu0 %240
      %v242 = vmul.f32 %v241, %v235
      %v243 = vadd.f32 %v242, 1e-12
      %v244 = vrsqrt.pop %v243
      %v245 = vmul.f32 %v237, %v244
      %v246 = vld [vmem:[%s3] sm:$0x1]
      %v248 = vlaneseq
      %v249 = vshrl.u32 %v248, 7
      %v250 = vsub.s32 0, %v249
      %v251 = vrot.slane %v246, %v250
      %v253 = vmul.f32 %v245, %v251
      %v254 = vld [vmem:[%s4] sm:$0x1]
      %v256 = vlaneseq
      %v257 = vshrl.u32 %v256, 7
      %v258 = vsub.s32 0, %v257
      %v259 = vrot.slane %v254, %v258
      %v261 = vadd.f32 %v253, %v259
      %262 = vst.msk [vmem:[%s219] sm:$0xff] %vm231, %v261
      %p263 = scmp.lt.s32.totalorder %s16, 1
      %s264 = scalar_select %p263, %s16, 1
      %s265 = smul.addr %s264, 8
      %s266 = scalar_lea.vmem %s5, %s265
      // Predicated region
      $region41: #{bert_mixup_forward.3} parent=39 // pred_check
        %p267 = pneg %p144
      $region42: #{bert_mixup_forward.3} parent=39 // pred_check_branch
        %269 = sbr.rel (%p267) target = $region44
      $region43: #{bert_mixup_forward.3} parent=39 // pred_region
        _
      $region44: #{bert_mixup_forward.3} parent=39 // pred_fallthru
        _
    $region40: #{bert_mixup_forward.3} parent=5 // pred_fallthru
      _
    %p270 = scmp.le.s32.totalorder 2, %s11
    // Predicated region
    $region45: #{bert_mixup_forward.3} parent=5 // pred_check
      %p271 = pneg %p270
    $region46: #{bert_mixup_forward.3} parent=5 // pred_check_branch
      %273 = sbr.rel (%p271) target = $region48
    $region47: #{bert_mixup_forward.3} parent=5 // pred_region
      %s274 = ssub.s32 %s11, 2
      // Predicated region
      $region49: #{bert_mixup_forward.3} parent=47 // pred_check
        %p275 = pneg %p150
      $region50: #{bert_mixup_forward.3} parent=47 // pred_check_branch
        %277 = sbr.rel (%p275) target = $region52
      $region51: #{bert_mixup_forward.3} parent=47 // pred_region
        %p278 = scmp.lt.s32.totalorder %s17, 1
        %s279 = scalar_select %p278, %s17, 1
        %s280 = smul.addr %s279, 8
        %s281 = scalar_lea.vmem %s5, %s280
      $region52: #{bert_mixup_forward.3} parent=47 // pred_fallthru
        _
    $region48: #{bert_mixup_forward.3} parent=5 // pred_fallthru
      _
  $region6: #{bert_mixup_forward.3} parent=0 // loop_footer
    %s15 = sadd.s32 1, %s11
  $region7: #{bert_mixup_forward.3} parent=0 // loop_footer_branch
    %10 = sbr.rel target = $region3
  $region8: #{bert_mixup_forward.3} parent=0 // loop_exit
    _

// kernel: bert_mixup_forward.4
$region0: #{bert_mixup_forward.4}
  #allocation0 [shape = 'u32[]', space=smem, size = 0x4, offset = 0x4, fixed_abs, tag = 'smem constant byte address 0x4 - core index']
  #allocation1 [shape = 'u32[144,128]{1,0:T(1,128)}', space=vmem, size = 0x12000, scoped, tag = 'internal scratch']
  %s0 = inlined_call_operand.vmem [shape: f32[2,8,32], index: 0, kind: input, shape index: {}]
  %s1 = inlined_call_operand.vmem [shape: f32[2,1,8], index: 1, kind: input, shape index: {}]
  %s2 = inlined_call_operand.vmem [shape: f32[2,32,16], index: 2, kind: input, shape index: {}]
  %s3 = inlined_call_operand.vmem [shape: f32[2,1,16], index: 3, kind: input, shape index: {}]
  %s4 = inlined_call_operand.vmem [shape: f32[2,32,16], index: 4, kind: input, shape index: {}]
  %s5 = inlined_call_operand.vmem [shape: f32[2,1,16], index: 5, kind: input, shape index: {}]
  %s6 = inlined_call_operand.vmem [shape: f32[2,32,16], index: 6, kind: input, shape index: {}]
  %s7 = inlined_call_operand.vmem [shape: f32[2,1,16], index: 7, kind: input, shape index: {}]
  %s8 = inlined_call_operand.vmem [shape: f32[2,16,32], index: 8, kind: input, shape index: {}]
  %s9 = inlined_call_operand.vmem [shape: f32[1,32], index: 9, kind: input, shape index: {}]
  %s10 = inlined_call_operand.vmem [shape: f32[1,32], index: 10, kind: input, shape index: {}]
  %s11 = inlined_call_operand.vmem [shape: f32[1,32], index: 11, kind: input, shape index: {}]
  %s12 = inlined_call_operand.vmem [shape: f32[32,64], index: 12, kind: input, shape index: {}]
  %s13 = inlined_call_operand.vmem [shape: f32[1,64], index: 13, kind: input, shape index: {}]
  %s14 = inlined_call_operand.vmem [shape: f32[64,32], index: 14, kind: input, shape index: {}]
  %s15 = inlined_call_operand.vmem [shape: f32[1,32], index: 15, kind: input, shape index: {}]
  %s16 = inlined_call_operand.vmem [shape: f32[1,32], index: 16, kind: input, shape index: {}]
  %s17 = inlined_call_operand.vmem [shape: f32[1,32], index: 17, kind: input, shape index: {}]
  %s18 = inlined_call_operand.vmem [shape: f32[2,8,32], index: 18, kind: output, shape index: {}]
  %s19 = sld [smem:[#allocation0]]
  $region105: #{bert_mixup_forward.4} parent=0
    _
  %s21 = ssub.s32 1, %s19
  %s22 = scalar_select 0, %s21, %s19
  loop: start=0, step=1, limit=4
  $region2: #{bert_mixup_forward.4} parent=0 // loop_pre_header
    _
  $region3: #{bert_mixup_forward.4} parent=0 // loop_header
    %s24 = sphi 0, %s28
    %p25 = scmp.ge.s32.totalorder %s24, 4
    %s34 = sphi 0, %s36
    %s37 = sphi 0, %s34
    %s38 = sphi 0, %s37
    %s54 = sphi 0, %s38
    %s60 = sphi 0, %s62
    %s63 = sphi 0, %s60
    %s64 = sphi 0, %s63
    %s80 = sphi 0, %s64
    %s84 = sphi 0, %s84
    %s86 = sphi 0, %s84
    %s87 = sphi 0, %s86
    %s101 = sphi 0, %s87
    %s105 = sphi 0, %s105
    %s107 = sphi 0, %s105
    %s108 = sphi 0, %s107
    %s122 = sphi 0, %s108
    %s126 = sphi 0, %s126
    %s128 = sphi 0, %s126
    %s129 = sphi 0, %s128
    %s143 = sphi 0, %s129
    %s147 = sphi 0, %s147
    %s149 = sphi 0, %s147
    %s150 = sphi 0, %s149
    %s164 = sphi 0, %s150
    %s168 = sphi 0, %s168
    %s170 = sphi 0, %s168
    %s171 = sphi 0, %s170
    %s185 = sphi 0, %s171
    %s189 = sphi 0, %s189
    %s191 = sphi 0, %s189
    %s192 = sphi 0, %s191
    %s206 = sphi 0, %s192
    %s210 = sphi 0, %s210
    %s212 = sphi 0, %s210
    %s213 = sphi 0, %s212
    %s227 = sphi 0, %s213
    %s231 = sphi 0, %s231
    %s233 = sphi 0, %s231
    %s234 = sphi 0, %s233
    %s248 = sphi 0, %s234
    %s252 = sphi 0, %s252
    %s254 = sphi 0, %s252
    %s255 = sphi 0, %s254
    %s269 = sphi 0, %s255
    %s273 = sphi 0, %s273
    %s275 = sphi 0, %s273
    %s276 = sphi 0, %s275
    %s290 = sphi 0, %s276
    %s294 = sphi 0, %s294
    %s296 = sphi 0, %s294
    %s297 = sphi 0, %s296
    %s311 = sphi 0, %s297
    %s315 = sphi 0, %s315
    %s317 = sphi 0, %s315
    %s318 = sphi 0, %s317
    %s332 = sphi 0, %s318
    %s336 = sphi 0, %s336
    %s338 = sphi 0, %s336
    %s339 = sphi 0, %s338
    %s353 = sphi 0, %s339
    %s357 = sphi 0, %s357
    %s359 = sphi 0, %s357
    %s360 = sphi 0, %s359
    %s374 = sphi 0, %s360
    %s378 = sphi 0, %s378
    %s380 = sphi 0, %s378
    %s381 = sphi 0, %s380
    %s395 = sphi 0, %s381
    %s399 = sphi 0, %s399
    %s401 = sphi 0, %s399
    %s402 = sphi 0, %s401
    %s416 = sphi 0, %s402
    %s422 = sphi 0, %s424
    %s425 = sphi 0, %s422
    %s426 = sphi 0, %s425
    %s442 = sphi 0, %s426
  $region4: #{bert_mixup_forward.4} parent=0 // loop_header_branch
    %27 = sbr.rel (%p25) target = $region8
  $region5: #{bert_mixup_forward.4} parent=0 // loop_body
    %s29 = ssub.s32 %s24, 1
    %s30 = ssub.s32 %s24, 2
    %s31 = sadd.s32 %s24, 1
    %s32 = ssub.s32 %s24, %s31
    %p33 = scmp.eq.s32.totalorder %s32, 0
    %s35 = sadd.s32 %s34, 1
    %s36 = scalar_select %p33, %s34, %s35
    %p39 = pneg %p33
    %p40 = scmp.eq.s32.totalorder %s24, 1
    %p41 = por %p39, %p40
    %p42 = scmp.ne.s32.totalorder %s34, %s37
    %p43 = scmp.eq.s32.totalorder %s24, 0
    %p44 = por %p42, %p43
    %p45 = scmp.ne.s32.totalorder %s34, %s37
    %p46 = scmp.eq.s32.totalorder %s29, 1
    %p47 = por %p45, %p46
    %p48 = scmp.ne.s32.totalorder %s37, %s38
    %p49 = scmp.eq.s32.totalorder %s29, 0
    %p50 = por %p48, %p49
    %p51 = scmp.ne.s32.totalorder %s37, %s38
    %p52 = scmp.eq.s32.totalorder %s30, 1
    %p53 = por %p51, %p52
    %p55 = scmp.ne.s32.totalorder %s38, %s54
    %p56 = scmp.eq.s32.totalorder %s30, 0
    %p57 = por %p55, %p56
    %s58 = ssub.s32 %s24, %s31
    %p59 = scmp.eq.s32.totalorder %s58, 0
    %s61 = sadd.s32 %s60, 1
    %s62 = scalar_select %p59, %s60, %s61
    %p65 = pneg %p59
    %p66 = scmp.eq.s32.totalorder %s24, 1
    %p67 = por %p65, %p66
    %p68 = scmp.ne.s32.totalorder %s60, %s63
    %p69 = scmp.eq.s32.totalorder %s24, 0
    %p70 = por %p68, %p69
    %p71 = scmp.ne.s32.totalorder %s60, %s63
    %p72 = scmp.eq.s32.totalorder %s29, 1
    %p73 = por %p71, %p72
    %p74 = scmp.ne.s32.totalorder %s63, %s64
    %p75 = scmp.eq.s32.totalorder %s29, 0
    %p76 = por %p74, %p75
    %p77 = scmp.ne.s32.totalorder %s63, %s64
    %p78 = scmp.eq.s32.totalorder %s30, 1
    %p79 = por %p77, %p78
    %p81 = scmp.ne.s32.totalorder %s64, %s80
    %p82 = scmp.eq.s32.totalorder %s30, 0
    %p83 = por %p81, %p82
    %s85 = sadd.s32 %s84, 1
    %p88 = scmp.eq.s32.totalorder %s24, 1
    %p89 = scmp.ne.s32.totalorder %s84, %s86
    %p90 = scmp.eq.s32.totalorder %s24, 0
    %p91 = por %p89, %p90
    %p92 = scmp.ne.s32.totalorder %s84, %s86
    %p93 = scmp.eq.s32.totalorder %s29, 1
    %p94 = por %p92, %p93
    %p95 = scmp.ne.s32.totalorder %s86, %s87
    %p96 = scmp.eq.s32.totalorder %s29, 0
    %p97 = por %p95, %p96
    %p98 = scmp.ne.s32.totalorder %s86, %s87
    %p99 = scmp.eq.s32.totalorder %s30, 1
    %p100 = por %p98, %p99
    %p102 = scmp.ne.s32.totalorder %s87, %s101
    %p103 = scmp.eq.s32.totalorder %s30, 0
    %p104 = por %p102, %p103
    %s106 = sadd.s32 %s105, 1
    %p109 = scmp.eq.s32.totalorder %s24, 1
    %p110 = scmp.ne.s32.totalorder %s105, %s107
    %p111 = scmp.eq.s32.totalorder %s24, 0
    %p112 = por %p110, %p111
    %p113 = scmp.ne.s32.totalorder %s105, %s107
    %p114 = scmp.eq.s32.totalorder %s29, 1
    %p115 = por %p113, %p114
    %p116 = scmp.ne.s32.totalorder %s107, %s108
    %p117 = scmp.eq.s32.totalorder %s29, 0
    %p118 = por %p116, %p117
    %p119 = scmp.ne.s32.totalorder %s107, %s108
    %p120 = scmp.eq.s32.totalorder %s30, 1
    %p121 = por %p119, %p120
    %p123 = scmp.ne.s32.totalorder %s108, %s122
    %p124 = scmp.eq.s32.totalorder %s30, 0
    %p125 = por %p123, %p124
    %s127 = sadd.s32 %s126, 1
    %p130 = scmp.eq.s32.totalorder %s24, 1
    %p131 = scmp.ne.s32.totalorder %s126, %s128
    %p132 = scmp.eq.s32.totalorder %s24, 0
    %p133 = por %p131, %p132
    %p134 = scmp.ne.s32.totalorder %s126, %s128
    %p135 = scmp.eq.s32.totalorder %s29, 1
    %p136 = por %p134, %p135
    %p137 = scmp.ne.s32.totalorder %s128, %s129
    %p138 = scmp.eq.s32.totalorder %s29, 0
    %p139 = por %p137, %p138
    %p140 = scmp.ne.s32.totalorder %s128, %s129
    %p141 = scmp.eq.s32.totalorder %s30, 1
    %p142 = por %p140, %p141
    %p144 = scmp.ne.s32.totalorder %s129, %s143
    %p145 = scmp.eq.s32.totalorder %s30, 0
    %p146 = por %p144, %p145
    %s148 = sadd.s32 %s147, 1
    %p151 = scmp.eq.s32.totalorder %s24, 1
    %p152 = scmp.ne.s32.totalorder %s147, %s149
    %p153 = scmp.eq.s32.totalorder %s24, 0
    %p154 = por %p152, %p153
    %p155 = scmp.ne.s32.totalorder %s147, %s149
    %p156 = scmp.eq.s32.totalorder %s29, 1
    %p157 = por %p155, %p156
    %p158 = scmp.ne.s32.totalorder %s149, %s150
    %p159 = scmp.eq.s32.totalorder %s29, 0
    %p160 = por %p158, %p159
    %p161 = scmp.ne.s32.totalorder %s149, %s150
    %p162 = scmp.eq.s32.totalorder %s30, 1
    %p163 = por %p161, %p162
    %p165 = scmp.ne.s32.totalorder %s150, %s164
    %p166 = scmp.eq.s32.totalorder %s30, 0
    %p167 = por %p165, %p166
    %s169 = sadd.s32 %s168, 1
    %p172 = scmp.eq.s32.totalorder %s24, 1
    %p173 = scmp.ne.s32.totalorder %s168, %s170
    %p174 = scmp.eq.s32.totalorder %s24, 0
    %p175 = por %p173, %p174
    %p176 = scmp.ne.s32.totalorder %s168, %s170
    %p177 = scmp.eq.s32.totalorder %s29, 1
    %p178 = por %p176, %p177
    %p179 = scmp.ne.s32.totalorder %s170, %s171
    %p180 = scmp.eq.s32.totalorder %s29, 0
    %p181 = por %p179, %p180
    %p182 = scmp.ne.s32.totalorder %s170, %s171
    %p183 = scmp.eq.s32.totalorder %s30, 1
    %p184 = por %p182, %p183
    %p186 = scmp.ne.s32.totalorder %s171, %s185
    %p187 = scmp.eq.s32.totalorder %s30, 0
    %p188 = por %p186, %p187
    %s190 = sadd.s32 %s189, 1
    %p193 = scmp.eq.s32.totalorder %s24, 1
    %p194 = scmp.ne.s32.totalorder %s189, %s191
    %p195 = scmp.eq.s32.totalorder %s24, 0
    %p196 = por %p194, %p195
    %p197 = scmp.ne.s32.totalorder %s189, %s191
    %p198 = scmp.eq.s32.totalorder %s29, 1
    %p199 = por %p197, %p198
    %p200 = scmp.ne.s32.totalorder %s191, %s192
    %p201 = scmp.eq.s32.totalorder %s29, 0
    %p202 = por %p200, %p201
    %p203 = scmp.ne.s32.totalorder %s191, %s192
    %p204 = scmp.eq.s32.totalorder %s30, 1
    %p205 = por %p203, %p204
    %p207 = scmp.ne.s32.totalorder %s192, %s206
    %p208 = scmp.eq.s32.totalorder %s30, 0
    %p209 = por %p207, %p208
    %s211 = sadd.s32 %s210, 1
    %p214 = scmp.eq.s32.totalorder %s24, 1
    %p215 = scmp.ne.s32.totalorder %s210, %s212
    %p216 = scmp.eq.s32.totalorder %s24, 0
    %p217 = por %p215, %p216
    %p218 = scmp.ne.s32.totalorder %s210, %s212
    %p219 = scmp.eq.s32.totalorder %s29, 1
    %p220 = por %p218, %p219
    %p221 = scmp.ne.s32.totalorder %s212, %s213
    %p222 = scmp.eq.s32.totalorder %s29, 0
    %p223 = por %p221, %p222
    %p224 = scmp.ne.s32.totalorder %s212, %s213
    %p225 = scmp.eq.s32.totalorder %s30, 1
    %p226 = por %p224, %p225
    %p228 = scmp.ne.s32.totalorder %s213, %s227
    %p229 = scmp.eq.s32.totalorder %s30, 0
    %p230 = por %p228, %p229
    %s232 = sadd.s32 %s231, 1
    %p235 = scmp.eq.s32.totalorder %s24, 1
    %p236 = scmp.ne.s32.totalorder %s231, %s233
    %p237 = scmp.eq.s32.totalorder %s24, 0
    %p238 = por %p236, %p237
    %p239 = scmp.ne.s32.totalorder %s231, %s233
    %p240 = scmp.eq.s32.totalorder %s29, 1
    %p241 = por %p239, %p240
    %p242 = scmp.ne.s32.totalorder %s233, %s234
    %p243 = scmp.eq.s32.totalorder %s29, 0
    %p244 = por %p242, %p243
    %p245 = scmp.ne.s32.totalorder %s233, %s234
    %p246 = scmp.eq.s32.totalorder %s30, 1
    %p247 = por %p245, %p246
    %p249 = scmp.ne.s32.totalorder %s234, %s248
    %p250 = scmp.eq.s32.totalorder %s30, 0
    %p251 = por %p249, %p250
    %s253 = sadd.s32 %s252, 1
    %p256 = scmp.eq.s32.totalorder %s24, 1
    %p257 = scmp.ne.s32.totalorder %s252, %s254
    %p258 = scmp.eq.s32.totalorder %s24, 0
    %p259 = por %p257, %p258
    %p260 = scmp.ne.s32.totalorder %s252, %s254
    %p261 = scmp.eq.s32.totalorder %s29, 1
    %p262 = por %p260, %p261
    %p263 = scmp.ne.s32.totalorder %s254, %s255
    %p264 = scmp.eq.s32.totalorder %s29, 0
    %p265 = por %p263, %p264
    %p266 = scmp.ne.s32.totalorder %s254, %s255
    %p267 = scmp.eq.s32.totalorder %s30, 1
    %p268 = por %p266, %p267
    %p270 = scmp.ne.s32.totalorder %s255, %s269
    %p271 = scmp.eq.s32.totalorder %s30, 0
    %p272 = por %p270, %p271
    %s274 = sadd.s32 %s273, 1
    %p277 = scmp.eq.s32.totalorder %s24, 1
    %p278 = scmp.ne.s32.totalorder %s273, %s275
    %p279 = scmp.eq.s32.totalorder %s24, 0
    %p280 = por %p278, %p279
    %p281 = scmp.ne.s32.totalorder %s273, %s275
    %p282 = scmp.eq.s32.totalorder %s29, 1
    %p283 = por %p281, %p282
    %p284 = scmp.ne.s32.totalorder %s275, %s276
    %p285 = scmp.eq.s32.totalorder %s29, 0
    %p286 = por %p284, %p285
    %p287 = scmp.ne.s32.totalorder %s275, %s276
    %p288 = scmp.eq.s32.totalorder %s30, 1
    %p289 = por %p287, %p288
    %p291 = scmp.ne.s32.totalorder %s276, %s290
    %p292 = scmp.eq.s32.totalorder %s30, 0
    %p293 = por %p291, %p292
    %s295 = sadd.s32 %s294, 1
    %p298 = scmp.eq.s32.totalorder %s24, 1
    %p299 = scmp.ne.s32.totalorder %s294, %s296
    %p300 = scmp.eq.s32.totalorder %s24, 0
    %p301 = por %p299, %p300
    %p302 = scmp.ne.s32.totalorder %s294, %s296
    %p303 = scmp.eq.s32.totalorder %s29, 1
    %p304 = por %p302, %p303
    %p305 = scmp.ne.s32.totalorder %s296, %s297
    %p306 = scmp.eq.s32.totalorder %s29, 0
    %p307 = por %p305, %p306
    %p308 = scmp.ne.s32.totalorder %s296, %s297
    %p309 = scmp.eq.s32.totalorder %s30, 1
    %p310 = por %p308, %p309
    %p312 = scmp.ne.s32.totalorder %s297, %s311
    %p313 = scmp.eq.s32.totalorder %s30, 0
    %p314 = por %p312, %p313
    %s316 = sadd.s32 %s315, 1
    %p319 = scmp.eq.s32.totalorder %s24, 1
    %p320 = scmp.ne.s32.totalorder %s315, %s317
    %p321 = scmp.eq.s32.totalorder %s24, 0
    %p322 = por %p320, %p321
    %p323 = scmp.ne.s32.totalorder %s315, %s317
    %p324 = scmp.eq.s32.totalorder %s29, 1
    %p325 = por %p323, %p324
    %p326 = scmp.ne.s32.totalorder %s317, %s318
    %p327 = scmp.eq.s32.totalorder %s29, 0
    %p328 = por %p326, %p327
    %p329 = scmp.ne.s32.totalorder %s317, %s318
    %p330 = scmp.eq.s32.totalorder %s30, 1
    %p331 = por %p329, %p330
    %p333 = scmp.ne.s32.totalorder %s318, %s332
    %p334 = scmp.eq.s32.totalorder %s30, 0
    %p335 = por %p333, %p334
    %s337 = sadd.s32 %s336, 1
    %p340 = scmp.eq.s32.totalorder %s24, 1
    %p341 = scmp.ne.s32.totalorder %s336, %s338
    %p342 = scmp.eq.s32.totalorder %s24, 0
    %p343 = por %p341, %p342
    %p344 = scmp.ne.s32.totalorder %s336, %s338
    %p345 = scmp.eq.s32.totalorder %s29, 1
    %p346 = por %p344, %p345
    %p347 = scmp.ne.s32.totalorder %s338, %s339
    %p348 = scmp.eq.s32.totalorder %s29, 0
    %p349 = por %p347, %p348
    %p350 = scmp.ne.s32.totalorder %s338, %s339
    %p351 = scmp.eq.s32.totalorder %s30, 1
    %p352 = por %p350, %p351
    %p354 = scmp.ne.s32.totalorder %s339, %s353
    %p355 = scmp.eq.s32.totalorder %s30, 0
    %p356 = por %p354, %p355
    %s358 = sadd.s32 %s357, 1
    %p361 = scmp.eq.s32.totalorder %s24, 1
    %p362 = scmp.ne.s32.totalorder %s357, %s359
    %p363 = scmp.eq.s32.totalorder %s24, 0
    %p364 = por %p362, %p363
    %p365 = scmp.ne.s32.totalorder %s357, %s359
    %p366 = scmp.eq.s32.totalorder %s29, 1
    %p367 = por %p365, %p366
    %p368 = scmp.ne.s32.totalorder %s359, %s360
    %p369 = scmp.eq.s32.totalorder %s29, 0
    %p370 = por %p368, %p369
    %p371 = scmp.ne.s32.totalorder %s359, %s360
    %p372 = scmp.eq.s32.totalorder %s30, 1
    %p373 = por %p371, %p372
    %p375 = scmp.ne.s32.totalorder %s360, %s374
    %p376 = scmp.eq.s32.totalorder %s30, 0
    %p377 = por %p375, %p376
    %s379 = sadd.s32 %s378, 1
    %p382 = scmp.eq.s32.totalorder %s24, 1
    %p383 = scmp.ne.s32.totalorder %s378, %s380
    %p384 = scmp.eq.s32.totalorder %s24, 0
    %p385 = por %p383, %p384
    %p386 = scmp.ne.s32.totalorder %s378, %s380
    %p387 = scmp.eq.s32.totalorder %s29, 1
    %p388 = por %p386, %p387
    %p389 = scmp.ne.s32.totalorder %s380, %s381
    %p390 = scmp.eq.s32.totalorder %s29, 0
    %p391 = por %p389, %p390
    %p392 = scmp.ne.s32.totalorder %s380, %s381
    %p393 = scmp.eq.s32.totalorder %s30, 1
    %p394 = por %p392, %p393
    %p396 = scmp.ne.s32.totalorder %s381, %s395
    %p397 = scmp.eq.s32.totalorder %s30, 0
    %p398 = por %p396, %p397
    %s400 = sadd.s32 %s399, 1
    %p403 = scmp.eq.s32.totalorder %s24, 1
    %p404 = scmp.ne.s32.totalorder %s399, %s401
    %p405 = scmp.eq.s32.totalorder %s24, 0
    %p406 = por %p404, %p405
    %p407 = scmp.ne.s32.totalorder %s399, %s401
    %p408 = scmp.eq.s32.totalorder %s29, 1
    %p409 = por %p407, %p408
    %p410 = scmp.ne.s32.totalorder %s401, %s402
    %p411 = scmp.eq.s32.totalorder %s29, 0
    %p412 = por %p410, %p411
    %p413 = scmp.ne.s32.totalorder %s401, %s402
    %p414 = scmp.eq.s32.totalorder %s30, 1
    %p415 = por %p413, %p414
    %p417 = scmp.ne.s32.totalorder %s402, %s416
    %p418 = scmp.eq.s32.totalorder %s30, 0
    %p419 = por %p417, %p418
    %s420 = ssub.s32 %s24, %s31
    %p421 = scmp.eq.s32.totalorder %s420, 0
    %s423 = sadd.s32 %s422, 1
    %s424 = scalar_select %p421, %s422, %s423
    %p427 = pneg %p421
    %p428 = scmp.eq.s32.totalorder %s24, 1
    %p429 = por %p427, %p428
    %p430 = scmp.ne.s32.totalorder %s422, %s425
    %p431 = scmp.eq.s32.totalorder %s24, 0
    %p432 = por %p430, %p431
    %p433 = scmp.ne.s32.totalorder %s422, %s425
    %p434 = scmp.eq.s32.totalorder %s29, 1
    %p435 = por %p433, %p434
    %p436 = scmp.ne.s32.totalorder %s425, %s426
    %p437 = scmp.eq.s32.totalorder %s29, 0
    %p438 = por %p436, %p437
    %p439 = scmp.ne.s32.totalorder %s425, %s426
    %p440 = scmp.eq.s32.totalorder %s30, 1
    %p441 = por %p439, %p440
    %p443 = scmp.ne.s32.totalorder %s426, %s442
    %p444 = scmp.eq.s32.totalorder %s30, 0
    %p445 = por %p443, %p444
    %p446 = scmp.le.s32.totalorder 1, %s24
    %p447 = scmp.lt.s32.totalorder %s24, 3
    %p448 = pnand %p446, %p447
    %p449 = pneg %p448
    // Predicated region
    $region9: #{bert_mixup_forward.4} parent=5 // pred_check
      _
    $region10: #{bert_mixup_forward.4} parent=5 // pred_check_branch
      %451 = sbr.rel (%p448) target = $region12
    $region11: #{bert_mixup_forward.4} parent=5 // pred_region
      %s452 = ssub.s32 %s24, 1
      // Predicated region
      $region13: #{bert_mixup_forward.4} parent=11 // pred_check
        %p453 = pneg %p97
      $region14: #{bert_mixup_forward.4} parent=11 // pred_check_branch
        %455 = sbr.rel (%p453) target = $region16
      $region15: #{bert_mixup_forward.4} parent=11 // pred_region
        _
      $region16: #{bert_mixup_forward.4} parent=11 // pred_fallthru
        _
      // Predicated region
      $region17: #{bert_mixup_forward.4} parent=11 // pred_check
        %p456 = pneg %p118
      $region18: #{bert_mixup_forward.4} parent=11 // pred_check_branch
        %458 = sbr.rel (%p456) target = $region20
      $region19: #{bert_mixup_forward.4} parent=11 // pred_region
        _
      $region20: #{bert_mixup_forward.4} parent=11 // pred_fallthru
        _
      // Predicated region
      $region21: #{bert_mixup_forward.4} parent=11 // pred_check
        %p459 = pneg %p139
      $region22: #{bert_mixup_forward.4} parent=11 // pred_check_branch
        %461 = sbr.rel (%p459) target = $region24
      $region23: #{bert_mixup_forward.4} parent=11 // pred_region
        _
      $region24: #{bert_mixup_forward.4} parent=11 // pred_fallthru
        _
      // Predicated region
      $region25: #{bert_mixup_forward.4} parent=11 // pred_check
        %p462 = pneg %p160
      $region26: #{bert_mixup_forward.4} parent=11 // pred_check_branch
        %464 = sbr.rel (%p462) target = $region28
      $region27: #{bert_mixup_forward.4} parent=11 // pred_region
        _
      $region28: #{bert_mixup_forward.4} parent=11 // pred_fallthru
        _
      // Predicated region
      $region29: #{bert_mixup_forward.4} parent=11 // pred_check
        %p465 = pneg %p181
      $region30: #{bert_mixup_forward.4} parent=11 // pred_check_branch
        %467 = sbr.rel (%p465) target = $region32
      $region31: #{bert_mixup_forward.4} parent=11 // pred_region
        _
      $region32: #{bert_mixup_forward.4} parent=11 // pred_fallthru
        _
      // Predicated region
      $region33: #{bert_mixup_forward.4} parent=11 // pred_check
        %p468 = pneg %p202
      $region34: #{bert_mixup_forward.4} parent=11 // pred_check_branch
        %470 = sbr.rel (%p468) target = $region36
      $region35: #{bert_mixup_forward.4} parent=11 // pred_region
        _
      $region36: #{bert_mixup_forward.4} parent=11 // pred_fallthru
        _
      // Predicated region
      $region37: #{bert_mixup_forward.4} parent=11 // pred_check
        %p471 = pneg %p223
      $region38: #{bert_mixup_forward.4} parent=11 // pred_check_branch
        %473 = sbr.rel (%p471) target = $region40
      $region39: #{bert_mixup_forward.4} parent=11 // pred_region
        _
      $region40: #{bert_mixup_forward.4} parent=11 // pred_fallthru
        _
      // Predicated region
      $region41: #{bert_mixup_forward.4} parent=11 // pred_check
        %p474 = pneg %p244
      $region42: #{bert_mixup_forward.4} parent=11 // pred_check_branch
        %476 = sbr.rel (%p474) target = $region44
      $region43: #{bert_mixup_forward.4} parent=11 // pred_region
        _
      $region44: #{bert_mixup_forward.4} parent=11 // pred_fallthru
        _
      // Predicated region
      $region45: #{bert_mixup_forward.4} parent=11 // pred_check
        %p477 = pneg %p265
      $region46: #{bert_mixup_forward.4} parent=11 // pred_check_branch
        %479 = sbr.rel (%p477) target = $region48
      $region47: #{bert_mixup_forward.4} parent=11 // pred_region
        _
      $region48: #{bert_mixup_forward.4} parent=11 // pred_fallthru
        _
      // Predicated region
      $region49: #{bert_mixup_forward.4} parent=11 // pred_check
        %p480 = pneg %p286
      $region50: #{bert_mixup_forward.4} parent=11 // pred_check_branch
        %482 = sbr.rel (%p480) target = $region52
      $region51: #{bert_mixup_forward.4} parent=11 // pred_region
        _
      $region52: #{bert_mixup_forward.4} parent=11 // pred_fallthru
        _
      // Predicated region
      $region53: #{bert_mixup_forward.4} parent=11 // pred_check
        %p483 = pneg %p307
      $region54: #{bert_mixup_forward.4} parent=11 // pred_check_branch
        %485 = sbr.rel (%p483) target = $region56
      $region55: #{bert_mixup_forward.4} parent=11 // pred_region
        _
      $region56: #{bert_mixup_forward.4} parent=11 // pred_fallthru
        _
      // Predicated region
      $region57: #{bert_mixup_forward.4} parent=11 // pred_check
        %p486 = pneg %p328
      $region58: #{bert_mixup_forward.4} parent=11 // pred_check_branch
        %488 = sbr.rel (%p486) target = $region60
      $region59: #{bert_mixup_forward.4} parent=11 // pred_region
        _
      $region60: #{bert_mixup_forward.4} parent=11 // pred_fallthru
        _
      // Predicated region
      $region61: #{bert_mixup_forward.4} parent=11 // pred_check
        %p489 = pneg %p349
      $region62: #{bert_mixup_forward.4} parent=11 // pred_check_branch
        %491 = sbr.rel (%p489) target = $region64
      $region63: #{bert_mixup_forward.4} parent=11 // pred_region
        _
      $region64: #{bert_mixup_forward.4} parent=11 // pred_fallthru
        _
      // Predicated region
      $region65: #{bert_mixup_forward.4} parent=11 // pred_check
        %p492 = pneg %p370
      $region66: #{bert_mixup_forward.4} parent=11 // pred_check_branch
        %494 = sbr.rel (%p492) target = $region68
      $region67: #{bert_mixup_forward.4} parent=11 // pred_region
        _
      $region68: #{bert_mixup_forward.4} parent=11 // pred_fallthru
        _
      // Predicated region
      $region69: #{bert_mixup_forward.4} parent=11 // pred_check
        %p495 = pneg %p391
      $region70: #{bert_mixup_forward.4} parent=11 // pred_check_branch
        %497 = sbr.rel (%p495) target = $region72
      $region71: #{bert_mixup_forward.4} parent=11 // pred_region
        _
      $region72: #{bert_mixup_forward.4} parent=11 // pred_fallthru
        _
      // Predicated region
      $region73: #{bert_mixup_forward.4} parent=11 // pred_check
        %p498 = pneg %p412
      $region74: #{bert_mixup_forward.4} parent=11 // pred_check_branch
        %500 = sbr.rel (%p498) target = $region76
      $region75: #{bert_mixup_forward.4} parent=11 // pred_region
        _
      $region76: #{bert_mixup_forward.4} parent=11 // pred_fallthru
        _
    $region12: #{bert_mixup_forward.4} parent=5 // pred_fallthru
      _
    %p501 = scmp.lt.s32.totalorder %s24, 2
    // Predicated region
    $region77: #{bert_mixup_forward.4} parent=5 // pred_check
      %p502 = pneg %p501
    $region78: #{bert_mixup_forward.4} parent=5 // pred_check_branch
      %504 = sbr.rel (%p502) target = $region80
    $region79: #{bert_mixup_forward.4} parent=5 // pred_region
      // Predicated region
      $region81: #{bert_mixup_forward.4} parent=79 // pred_check
        %p505 = pneg %p44
      $region82: #{bert_mixup_forward.4} parent=79 // pred_check_branch
        %507 = sbr.rel (%p505) target = $region84
      $region83: #{bert_mixup_forward.4} parent=79 // pred_region
        %p508 = scmp.lt.s32.totalorder %s24, 1
        %s509 = scalar_select %p508, %s24, 1
        %s510 = smul.addr %s509, 8
        %s511 = scalar_lea.vmem %s0, %s510
      $region84: #{bert_mixup_forward.4} parent=79 // pred_fallthru
        _
      // Predicated region
      $region85: #{bert_mixup_forward.4} parent=79 // pred_check
        %p512 = pneg %p70
      $region86: #{bert_mixup_forward.4} parent=79 // pred_check_branch
        %514 = sbr.rel (%p512) target = $region88
      $region87: #{bert_mixup_forward.4} parent=79 // pred_region
        %p515 = scmp.lt.s32.totalorder %s24, 1
        %s516 = scalar_select %p515, %s24, 1
        %s517 = scalar_lea.vmem %s1, %s516
      $region88: #{bert_mixup_forward.4} parent=79 // pred_fallthru
        _
    $region80: #{bert_mixup_forward.4} parent=5 // pred_fallthru
      _
    %p518 = scmp.le.s32.totalorder 1, %s24
    %p519 = scmp.lt.s32.totalorder %s24, 3
    %p520 = pnand %p518, %p519
    %p521 = pneg %p520
    // Predicated region
    $region89: #{bert_mixup_forward.4} parent=5 // pred_check
      _
    $region90: #{bert_mixup_forward.4} parent=5 // pred_check_branch
      %523 = sbr.rel (%p520) target = $region92
    $region91: #{bert_mixup_forward.4} parent=5 // pred_region
      %s524 = ssub.s32 %s24, 1
      %p525 = scmp.lt.s32.totalorder %s29, 1
      %s526 = scalar_select %p525, %s29, 1
      %s527 = smul.addr %s526, 8
      %s528 = scalar_lea.vmem %s0, %s527
      %p529 = pneg %p50
      %p530 = pneg %p47
      %p531 = scmp.lt.s32.totalorder %s29, 1
      %s532 = scalar_select %p531, %s29, 1
      %s533 = scalar_lea.vmem %s1, %s532
      %p534 = pneg %p76
      %p535 = pneg %p73
      %p536 = pneg %p97
      %p537 = pneg %p94
      %p538 = pneg %p118
      %p539 = pneg %p115
      %p540 = pneg %p139
      %p541 = pneg %p136
      %p542 = pneg %p160
      %p543 = pneg %p157
      %p544 = pneg %p181
      %p545 = pneg %p178
      %p546 = pneg %p202
      %p547 = pneg %p199
      %p548 = pneg %p223
      %p549 = pneg %p220
      %p550 = pneg %p244
      %p551 = pneg %p241
      %p552 = pneg %p265
      %p553 = pneg %p262
      %p554 = pneg %p286
      %p555 = pneg %p283
      %p556 = pneg %p307
      %p557 = pneg %p304
      %p558 = pneg %p328
      %p559 = pneg %p325
      %p560 = pneg %p349
      %p561 = pneg %p346
      %p562 = pneg %p370
      %p563 = pneg %p367
      %p564 = pneg %p391
      %p565 = pneg %p388
      %p566 = pneg %p412
      %p567 = pneg %p409
      %p568 = pneg %p438
      %p569 = pneg %p435
      %p570 = scmp.lt.s32.totalorder %s29, 1
      %s571 = scalar_select %p570, %s29, 1
      %s572 = smul.addr %s571, 8
      %s573 = scalar_lea.vmem %s18, %s572
      %p574 = scmp.lt.s32.totalorder %s29, 1
      %s575 = scalar_select %p574, %s29, 1
      %s576 = smul.addr %s575, 8
      %s577 = scalar_lea.vmem %s0, %s576
      %p578 = scmp.lt.s32.totalorder %s29, 1
      %s579 = scalar_select %p578, %s29, 1
      %s580 = scalar_lea.vmem %s1, %s579
      %p581 = scmp.lt.s32.totalorder %s29, 1
      %s582 = scalar_select %p581, %s29, 1
      %s583 = smul.addr %s582, 8
      %s584 = scalar_lea.vmem %s18, %s583
      %v585 = vld [vmem:[%s577] sm:$0xff]
      %v586 = vld [vmem:[%s580] sm:$0x1]
      %v587 = vld [vmem:[%s2] sm:$0xff]
      %v588 = vld [vmem:[%s2 + $0x8] sm:$0xff]
      %v589 = vld [vmem:[%s2 + $0x10] sm:$0xff]
      %v590 = vld [vmem:[%s2 + $0x18] sm:$0xff]
      %v591 = vld [vmem:[%s3] sm:$0x1]
      %v593 = vlaneseq
      %v594 = vshrl.u32 %v593, 7
      %v595 = vsub.s32 0, %v594
      %v596 = vrot.slane %v591, %v595
      %vm598 = vcmask 261120
      %v600 = vsel %vm598, %v585, 0
      %602 = vmatprep.subr.mxu0 0.0
      %603 = vmatpush1.msra.mxu0 0.0
      %604 = vmatprep.subr.mxu0 0.0
      %605 = vmatpush1.msra.mxu0 0.0
      %606 = vmatprep.subr.mxu0 0.0
      %607 = vmatpush1.msra.mxu0 0.0
      %608 = vmatprep.subr.mxu0 0.0
      %609 = vmatpush1.msra.mxu0 0.0
      %610 = vmatprep.subr.mxu0 0.0
      %611 = vmatpush1.msra.mxu0 0.0
      %612 = vmatprep.subr.mxu0 0.0
      %613 = vmatpush1.msra.mxu0 0.0
      %614 = vmatprep.subr.mxu0 0.0
      %615 = vmatpush1.msra.mxu0 0.0
      %616 = vmatprep.subr.mxu0 0.0
      %617 = vmatpush1.msra.mxu0 0.0
      %618 = vmatprep.subr.mxu0 0.0
      %619 = vmatpush1.msra.mxu0 0.0
      %620 = vmatprep.subr.mxu0 0.0
      %621 = vmatpush1.msra.mxu0 0.0
      %622 = vmatprep.subr.mxu0 0.0
      %623 = vmatpush1.msra.mxu0 0.0
      %624 = vmatprep.subr.mxu0 0.0
      %625 = vmatpush1.msra.mxu0 0.0
      %626 = vmatprep.subr.mxu0 0.0
      %627 = vmatpush1.msra.mxu0 %v590
      %628 = vmatprep.subr.mxu0 0.0
      %629 = vmatpush1.msra.mxu0 %v589
      %630 = vmatprep.subr.mxu0 0.0
      %631 = vmatpush1.msra.mxu0 %v588
      %632 = vmatprep.subr.mxu0 0.0
      %633 = vmatpush1.msra.mxu0 %v587
      %634 = vmatprep.subr.mxu0 0.0
      %635 = vmatpush2.msra.mxu0 0.0
      %636 = vmatprep.subr.mxu0 0.0
      %637 = vmatpush2.msra.mxu0 0.0
      %638 = vmatprep.subr.mxu0 0.0
      %639 = vmatpush2.msra.mxu0 0.0
      %640 = vmatprep.subr.mxu0 0.0
      %641 = vmatpush2.msra.mxu0 0.0
      %642 = vmatprep.subr.mxu0 0.0
      %643 = vmatpush2.msra.mxu0 0.0
      %644 = vmatprep.subr.mxu0 0.0
      %645 = vmatpush2.msra.mxu0 0.0
      %646 = vmatprep.subr.mxu0 0.0
      %647 = vmatpush2.msra.mxu0 0.0
      %648 = vmatprep.subr.mxu0 0.0
      %649 = vmatpush2.msra.mxu0 0.0
      %650 = vmatprep.subr.mxu0 0.0
      %651 = vmatpush2.msra.mxu0 0.0
      %652 = vmatprep.subr.mxu0 0.0
      %653 = vmatpush2.msra.mxu0 0.0
      %654 = vmatprep.subr.mxu0 0.0
      %655 = vmatpush2.msra.mxu0 0.0
      %656 = vmatprep.subr.mxu0 0.0
      %657 = vmatpush2.msra.mxu0 0.0
      %658 = vmatprep.subr.mxu0 0.0
      %659 = vmatpush2.msra.mxu0 0.0
      %660 = vmatprep.subr.mxu0 0.0
      %661 = vmatpush2.msra.mxu0 0.0
      %662 = vmatprep.subr.mxu0 0.0
      %663 = vmatpush2.msra.mxu0 0.0
      %664 = vmatprep.subr.mxu0 0.0
      %665 = vmatpush2.msra.mxu0 0.0
      %666 = vmatprep.mubr.f32.mxu0 0.0
      %667 = vmatmul.mubr.f32.gmra.mxu0 %v600
      %v668 = vpop.f32.mrf.mxu0
      %v669 = vadd.f32 %v596, %v668
      %v670 = vpop.f32.mrf.mxu0
      %671 = vdwg.mxu0
      %v672 = vld [vmem:[%s4] sm:$0xff]
      %v673 = vld [vmem:[%s4 + $0x8] sm:$0xff]
      %v674 = vld [vmem:[%s4 + $0x10] sm:$0xff]
      %v675 = vld [vmem:[%s4 + $0x18] sm:$0xff]
      %v676 = vld [vmem:[%s5] sm:$0x1]
      %v678 = vlaneseq
      %v679 = vshrl.u32 %v678, 7
      %v680 = vsub.s32 0, %v679
      %v681 = vrot.slane %v676, %v680
      %683 = vmatprep.subr.mxu0 0.0
      %684 = vmatpush1.msra.mxu0 0.0
      %685 = vmatprep.subr.mxu0 0.0
      %686 = vmatpush1.msra.mxu0 0.0
      %687 = vmatprep.subr.mxu0 0.0
      %688 = vmatpush1.msra.mxu0 0.0
      %689 = vmatprep.subr.mxu0 0.0
      %690 = vmatpush1.msra.mxu0 0.0
      %691 = vmatprep.subr.mxu0 0.0
      %692 = vmatpush1.msra.mxu0 0.0
      %693 = vmatprep.subr.mxu0 0.0
      %694 = vmatpush1.msra.mxu0 0.0
      %695 = vmatprep.subr.mxu0 0.0
      %696 = vmatpush1.msra.mxu0 0.0
      %697 = vmatprep.subr.mxu0 0.0
      %698 = vmatpush1.msra.mxu0 0.0
      %699 = vmatprep.subr.mxu0 0.0
      %700 = vmatpush1.msra.mxu0 0.0
      %701 = vmatprep.subr.mxu0 0.0
      %702 = vmatpush1.msra.mxu0 0.0
      %703 = vmatprep.subr.mxu0 0.0
      %704 = vmatpush1.msra.mxu0 0.0
      %705 = vmatprep.subr.mxu0 0.0
      %706 = vmatpush1.msra.mxu0 0.0
      %707 = vmatprep.subr.mxu0 0.0
      %708 = vmatpush1.msra.mxu0 %v675
      %709 = vmatprep.subr.mxu0 0.0
      %710 = vmatpush1.msra.mxu0 %v674
      %711 = vmatprep.subr.mxu0 0.0
      %712 = vmatpush1.msra.mxu0 %v673
      %713 = vmatprep.subr.mxu0 0.0
      %714 = vmatpush1.msra.mxu0 %v672
      %715 = vmatprep.subr.mxu0 0.0
      %716 = vmatpush2.msra.mxu0 0.0
      %717 = vmatprep.subr.mxu0 0.0
      %718 = vmatpush2.msra.mxu0 0.0
      %719 = vmatprep.subr.mxu0 0.0
      %720 = vmatpush2.msra.mxu0 0.0
      %721 = vmatprep.subr.mxu0 0.0
      %722 = vmatpush2.msra.mxu0 0.0
      %723 = vmatprep.subr.mxu0 0.0
      %724 = vmatpush2.msra.mxu0 0.0
      %725 = vmatprep.subr.mxu0 0.0
      %726 = vmatpush2.msra.mxu0 0.0
      %727 = vmatprep.subr.mxu0 0.0
      %728 = vmatpush2.msra.mxu0 0.0
      %729 = vmatprep.subr.mxu0 0.0
      %730 = vmatpush2.msra.mxu0 0.0
      %731 = vmatprep.subr.mxu0 0.0
      %732 = vmatpush2.msra.mxu0 0.0
      %733 = vmatprep.subr.mxu0 0.0
      %734 = vmatpush2.msra.mxu0 0.0
      %735 = vmatprep.subr.mxu0 0.0
      %736 = vmatpush2.msra.mxu0 0.0
      %737 = vmatprep.subr.mxu0 0.0
      %738 = vmatpush2.msra.mxu0 0.0
      %739 = vmatprep.subr.mxu0 0.0
      %740 = vmatpush2.msra.mxu0 0.0
      %741 = vmatprep.subr.mxu0 0.0
      %742 = vmatpush2.msra.mxu0 0.0
      %743 = vmatprep.subr.mxu0 0.0
      %744 = vmatpush2.msra.mxu0 0.0
      %745 = vmatprep.subr.mxu0 0.0
      %746 = vmatpush2.msra.mxu0 0.0
      %747 = vmatprep.mubr.f32.mxu0 0.0
      %748 = vmatmul.mubr.f32.gmra.mxu0 %v600
      %v749 = vpop.f32.mrf.mxu0
      %v750 = vadd.f32 %v681, %v749
      %v751 = vpop.f32.mrf.mxu0
      %752 = vdwg.mxu0
      %v753 = vld [vmem:[%s6] sm:$0xff]
      %v754 = vld [vmem:[%s6 + $0x8] sm:$0xff]
      %v755 = vld [vmem:[%s6 + $0x10] sm:$0xff]
      %v756 = vld [vmem:[%s6 + $0x18] sm:$0xff]
      %v757 = vld [vmem:[%s7] sm:$0x1]
      %v759 = vlaneseq
      %v760 = vshrl.u32 %v759, 7
      %v761 = vsub.s32 0, %v760
      %v762 = vrot.slane %v757, %v761
      %764 = vmatprep.subr.mxu0 0.0
      %765 = vmatpush1.msra.mxu0 0.0
      %766 = vmatprep.subr.mxu0 0.0
      %767 = vmatpush1.msra.mxu0 0.0
      %768 = vmatprep.subr.mxu0 0.0
      %769 = vmatpush1.msra.mxu0 0.0
      %770 = vmatprep.subr.mxu0 0.0
      %771 = vmatpush1.msra.mxu0 0.0
      %772 = vmatprep.subr.mxu0 0.0
      %773 = vmatpush1.msra.mxu0 0.0
      %774 = vmatprep.subr.mxu0 0.0
      %775 = vmatpush1.msra.mxu0 0.0
      %776 = vmatprep.subr.mxu0 0.0
      %777 = vmatpush1.msra.mxu0 0.0
      %778 = vmatprep.subr.mxu0 0.0
      %779 = vmatpush1.msra.mxu0 0.0
      %780 = vmatprep.subr.mxu0 0.0
      %781 = vmatpush1.msra.mxu0 0.0
      %782 = vmatprep.subr.mxu0 0.0
      %783 = vmatpush1.msra.mxu0 0.0
      %784 = vmatprep.subr.mxu0 0.0
      %785 = vmatpush1.msra.mxu0 0.0
      %786 = vmatprep.subr.mxu0 0.0
      %787 = vmatpush1.msra.mxu0 0.0
      %788 = vmatprep.subr.mxu0 0.0
      %789 = vmatpush1.msra.mxu0 %v756
      %790 = vmatprep.subr.mxu0 0.0
      %791 = vmatpush1.msra.mxu0 %v755
      %792 = vmatprep.subr.mxu0 0.0
      %793 = vmatpush1.msra.mxu0 %v754
      %794 = vmatprep.subr.mxu0 0.0
      %795 = vmatpush1.msra.mxu0 %v753
      %796 = vmatprep.subr.mxu0 0.0
      %797 = vmatpush2.msra.mxu0 0.0
      %798 = vmatprep.subr.mxu0 0.0
      %799 = vmatpush2.msra.mxu0 0.0
      %800 = vmatprep.subr.mxu0 0.0
      %801 = vmatpush2.msra.mxu0 0.0
      %802 = vmatprep.subr.mxu0 0.0
      %803 = vmatpush2.msra.mxu0 0.0
      %804 = vmatprep.subr.mxu0 0.0
      %805 = vmatpush2.msra.mxu0 0.0
      %806 = vmatprep.subr.mxu0 0.0
      %807 = vmatpush2.msra.mxu0 0.0
      %808 = vmatprep.subr.mxu0 0.0
      %809 = vmatpush2.msra.mxu0 0.0
      %810 = vmatprep.subr.mxu0 0.0
      %811 = vmatpush2.msra.mxu0 0.0
      %812 = vmatprep.subr.mxu0 0.0
      %813 = vmatpush2.msra.mxu0 0.0
      %814 = vmatprep.subr.mxu0 0.0
      %815 = vmatpush2.msra.mxu0 0.0
      %816 = vmatprep.subr.mxu0 0.0
      %817 = vmatpush2.msra.mxu0 0.0
      %818 = vmatprep.subr.mxu0 0.0
      %819 = vmatpush2.msra.mxu0 0.0
      %820 = vmatprep.subr.mxu0 0.0
      %821 = vmatpush2.msra.mxu0 0.0
      %822 = vmatprep.subr.mxu0 0.0
      %823 = vmatpush2.msra.mxu0 0.0
      %824 = vmatprep.subr.mxu0 0.0
      %825 = vmatpush2.msra.mxu0 0.0
      %826 = vmatprep.subr.mxu0 0.0
      %827 = vmatpush2.msra.mxu0 0.0
      %828 = vmatprep.mubr.f32.mxu0 0.0
      %829 = vmatmul.mubr.f32.gmra.mxu0 %v600
      %v830 = vpop.f32.mrf.mxu0
      %v831 = vadd.f32 %v762, %v830
      %v832 = vpop.f32.mrf.mxu0
      %833 = vdwg.mxu0
      %vm834 = vcmask 130048
      %v836 = vsel %vm834, %v669, 0
      %v839 = vsel %vm834, %v750, 0
      %841 = vmatprep.subr.mxu0 0.0
      %842 = vmatpush1.xpose.msra.mxu0 0.0
      %843 = vmatprep.subr.mxu0 0.0
      %844 = vmatpush1.xpose.msra.mxu0 0.0
      %845 = vmatprep.subr.mxu0 0.0
      %846 = vmatpush1.xpose.msra.mxu0 0.0
      %847 = vmatprep.subr.mxu0 0.0
      %848 = vmatpush1.xpose.msra.mxu0 0.0
      %849 = vmatprep.subr.mxu0 0.0
      %850 = vmatpush1.xpose.msra.mxu0 0.0
      %851 = vmatprep.subr.mxu0 0.0
      %852 = vmatpush1.xpose.msra.mxu0 0.0
      %853 = vmatprep.subr.mxu0 0.0
      %854 = vmatpush1.xpose.msra.mxu0 0.0
      %855 = vmatprep.subr.mxu0 0.0
      %856 = vmatpush1.xpose.msra.mxu0 0.0
      %857 = vmatprep.subr.mxu0 0.0
      %858 = vmatpush1.xpose.msra.mxu0 0.0
      %859 = vmatprep.subr.mxu0 0.0
      %860 = vmatpush1.xpose.msra.mxu0 0.0
      %861 = vmatprep.subr.mxu0 0.0
      %862 = vmatpush1.xpose.msra.mxu0 0.0
      %863 = vmatprep.subr.mxu0 0.0
      %864 = vmatpush1.xpose.msra.mxu0 0.0
      %865 = vmatprep.subr.mxu0 0.0
      %866 = vmatpush1.xpose.msra.mxu0 0.0
      %867 = vmatprep.subr.mxu0 0.0
      %868 = vmatpush1.xpose.msra.mxu0 0.0
      %869 = vmatprep.subr.mxu0 0.0
      %870 = vmatpush1.xpose.msra.mxu0 0.0
      %871 = vmatprep.subr.mxu0 0.0
      %872 = vmatpush1.xpose.msra.mxu0 %v839
      %873 = vmatprep.subr.mxu0 0.0
      %874 = vmatpush2.xpose.msra.mxu0 0.0
      %875 = vmatprep.subr.mxu0 0.0
      %876 = vmatpush2.xpose.msra.mxu0 0.0
      %877 = vmatprep.subr.mxu0 0.0
      %878 = vmatpush2.xpose.msra.mxu0 0.0
      %879 = vmatprep.subr.mxu0 0.0
      %880 = vmatpush2.xpose.msra.mxu0 0.0
      %881 = vmatprep.subr.mxu0 0.0
      %882 = vmatpush2.xpose.msra.mxu0 0.0
      %883 = vmatprep.subr.mxu0 0.0
      %884 = vmatpush2.xpose.msra.mxu0 0.0
      %885 = vmatprep.subr.mxu0 0.0
      %886 = vmatpush2.xpose.msra.mxu0 0.0
      %887 = vmatprep.subr.mxu0 0.0
      %888 = vmatpush2.xpose.msra.mxu0 0.0
      %889 = vmatprep.subr.mxu0 0.0
      %890 = vmatpush2.xpose.msra.mxu0 0.0
      %891 = vmatprep.subr.mxu0 0.0
      %892 = vmatpush2.xpose.msra.mxu0 0.0
      %893 = vmatprep.subr.mxu0 0.0
      %894 = vmatpush2.xpose.msra.mxu0 0.0
      %895 = vmatprep.subr.mxu0 0.0
      %896 = vmatpush2.xpose.msra.mxu0 0.0
      %897 = vmatprep.subr.mxu0 0.0
      %898 = vmatpush2.xpose.msra.mxu0 0.0
      %899 = vmatprep.subr.mxu0 0.0
      %900 = vmatpush2.xpose.msra.mxu0 0.0
      %901 = vmatprep.subr.mxu0 0.0
      %902 = vmatpush2.xpose.msra.mxu0 0.0
      %903 = vmatprep.subr.mxu0 0.0
      %904 = vmatpush2.xpose.msra.mxu0 0.0
      %905 = vmatprep.mubr.f32.mxu0 0.0
      %906 = vmatmul.mubr.f32.gmra.mxu0 %v836
      %v907 = vpop.f32.mrf.mxu0
      %v908 = vadd.f32 0.0, %v907
      %v909 = vpop.f32.mrf.mxu0
      %910 = vdwg.mxu0
      %v911 = vmul.f32 %v908, 0.25
      %v913 = vlaneseq
      %v914 = vshrl.u32 %v913, 7
      %v915 = vsub.s32 0, %v914
      %v916 = vrot.slane %v586, %v915
      %v918 = vadd.f32 %v911, %v916
      %vm919 = vcmask 64512
      %v920 = vsel %vm919, %v918, -inf
      %921 = vmax.xlane.f32.xlu0 %v920
      %v922 = vpop.xlane.xlu0 %921
      %v923 = vsub.f32 %v918, %v922
      %v924 = vmul.f32 %v923, 1.442695
      %v925 = vpow.pop %v924
      %v926 = vsel %vm919, %v925, 0.0
      %927 = vadd.xlane.f32.xlu0 %v926
      %v928 = vpop.xlane.xlu0 %927
      %v929 = vrcp.pop %v928
      %v930 = vmul.f32 %v925, %v929
      %v932 = vsel %vm919, %v930, 0
      %934 = vmatprep.subr.mxu0 0.0
      %935 = vmatpush1.msra.mxu0 0.0
      %936 = vmatprep.subr.mxu0 0.0
      %937 = vmatpush1.msra.mxu0 0.0
      %938 = vmatprep.subr.mxu0 0.0
      %939 = vmatpush1.msra.mxu0 0.0
      %940 = vmatprep.subr.mxu0 0.0
      %941 = vmatpush1.msra.mxu0 0.0
      %942 = vmatprep.subr.mxu0 0.0
      %943 = vmatpush1.msra.mxu0 0.0
      %944 = vmatprep.subr.mxu0 0.0
      %945 = vmatpush1.msra.mxu0 0.0
      %946 = vmatprep.subr.mxu0 0.0
      %947 = vmatpush1.msra.mxu0 0.0
      %948 = vmatprep.subr.mxu0 0.0
      %949 = vmatpush1.msra.mxu0 0.0
      %950 = vmatprep.subr.mxu0 0.0
      %951 = vmatpush1.msra.mxu0 0.0
      %952 = vmatprep.subr.mxu0 0.0
      %953 = vmatpush1.msra.mxu0 0.0
      %954 = vmatprep.subr.mxu0 0.0
      %955 = vmatpush1.msra.mxu0 0.0
      %956 = vmatprep.subr.mxu0 0.0
      %957 = vmatpush1.msra.mxu0 0.0
      %958 = vmatprep.subr.mxu0 0.0
      %959 = vmatpush1.msra.mxu0 0.0
      %960 = vmatprep.subr.mxu0 0.0
      %961 = vmatpush1.msra.mxu0 0.0
      %962 = vmatprep.subr.mxu0 0.0
      %963 = vmatpush1.msra.mxu0 0.0
      %964 = vmatprep.subr.mxu0 0.0
      %965 = vmatpush1.msra.mxu0 %v831
      %966 = vmatprep.subr.mxu0 0.0
      %967 = vmatpush2.msra.mxu0 0.0
      %968 = vmatprep.subr.mxu0 0.0
      %969 = vmatpush2.msra.mxu0 0.0
      %970 = vmatprep.subr.mxu0 0.0
      %971 = vmatpush2.msra.mxu0 0.0
      %972 = vmatprep.subr.mxu0 0.0
      %973 = vmatpush2.msra.mxu0 0.0
      %974 = vmatprep.subr.mxu0 0.0
      %975 = vmatpush2.msra.mxu0 0.0
      %976 = vmatprep.subr.mxu0 0.0
      %977 = vmatpush2.msra.mxu0 0.0
      %978 = vmatprep.subr.mxu0 0.0
      %979 = vmatpush2.msra.mxu0 0.0
      %980 = vmatprep.subr.mxu0 0.0
      %981 = vmatpush2.msra.mxu0 0.0
      %982 = vmatprep.subr.mxu0 0.0
      %983 = vmatpush2.msra.mxu0 0.0
      %984 = vmatprep.subr.mxu0 0.0
      %985 = vmatpush2.msra.mxu0 0.0
      %986 = vmatprep.subr.mxu0 0.0
      %987 = vmatpush2.msra.mxu0 0.0
      %988 = vmatprep.subr.mxu0 0.0
      %989 = vmatpush2.msra.mxu0 0.0
      %990 = vmatprep.subr.mxu0 0.0
      %991 = vmatpush2.msra.mxu0 0.0
      %992 = vmatprep.subr.mxu0 0.0
      %993 = vmatpush2.msra.mxu0 0.0
      %994 = vmatprep.subr.mxu0 0.0
      %995 = vmatpush2.msra.mxu0 0.0
      %996 = vmatprep.subr.mxu0 0.0
      %997 = vmatpush2.msra.mxu0 0.0
      %998 = vmatprep.mubr.f32.mxu0 0.0
      %999 = vmatmul.mubr.f32.gmra.mxu0 %v932
      %v1000 = vpop.f32.mrf.mxu0
      %v1001 = vadd.f32 0.0, %v1000
      %v1002 = vpop.f32.mrf.mxu0
      %1003 = vdwg.mxu0
      %v1004 = vld [vmem:[%s8] sm:$0xff]
      %v1005 = vld [vmem:[%s8 + $0x8] sm:$0xff]
      %s1006 = scalar_lea.vmem %s2, 32
      %v1007 = vld [vmem:[%s1006] sm:$0xff]
      %v1008 = vld [vmem:[%s1006 + $0x8] sm:$0xff]
      %v1009 = vld [vmem:[%s1006 + $0x10] sm:$0xff]
      %v1010 = vld [vmem:[%s1006 + $0x18] sm:$0xff]
      %s1011 = scalar_lea.vmem %s3, 1
      %v1012 = vld [vmem:[%s1011] sm:$0x1]
      %v1014 = vlaneseq
      %v1015 = vshrl.u32 %v1014, 7
      %v1016 = vsub.s32 0, %v1015
      %v1017 = vrot.slane %v1012, %v1016
      %1019 = vmatprep.subr.mxu0 0.0
      %1020 = vmatpush1.msra.mxu0 0.0
      %1021 = vmatprep.subr.mxu0 0.0
      %1022 = vmatpush1.msra.mxu0 0.0
      %1023 = vmatprep.subr.mxu0 0.0
      %1024 = vmatpush1.msra.mxu0 0.0
      %1025 = vmatprep.subr.mxu0 0.0
      %1026 = vmatpush1.msra.mxu0 0.0
      %1027 = vmatprep.subr.mxu0 0.0
      %1028 = vmatpush1.msra.mxu0 0.0
      %1029 = vmatprep.subr.mxu0 0.0
      %1030 = vmatpush1.msra.mxu0 0.0
      %1031 = vmatprep.subr.mxu0 0.0
      %1032 = vmatpush1.msra.mxu0 0.0
      %1033 = vmatprep.subr.mxu0 0.0
      %1034 = vmatpush1.msra.mxu0 0.0
      %1035 = vmatprep.subr.mxu0 0.0
      %1036 = vmatpush1.msra.mxu0 0.0
      %1037 = vmatprep.subr.mxu0 0.0
      %1038 = vmatpush1.msra.mxu0 0.0
      %1039 = vmatprep.subr.mxu0 0.0
      %1040 = vmatpush1.msra.mxu0 0.0
      %1041 = vmatprep.subr.mxu0 0.0
      %1042 = vmatpush1.msra.mxu0 0.0
      %1043 = vmatprep.subr.mxu0 0.0
      %1044 = vmatpush1.msra.mxu0 %v1010
      %1045 = vmatprep.subr.mxu0 0.0
      %1046 = vmatpush1.msra.mxu0 %v1009
      %1047 = vmatprep.subr.mxu0 0.0
      %1048 = vmatpush1.msra.mxu0 %v1008
      %1049 = vmatprep.subr.mxu0 0.0
      %1050 = vmatpush1.msra.mxu0 %v1007
      %1051 = vmatprep.subr.mxu0 0.0
      %1052 = vmatpush2.msra.mxu0 0.0
      %1053 = vmatprep.subr.mxu0 0.0
      %1054 = vmatpush2.msra.mxu0 0.0
      %1055 = vmatprep.subr.mxu0 0.0
      %1056 = vmatpush2.msra.mxu0 0.0
      %1057 = vmatprep.subr.mxu0 0.0
      %1058 = vmatpush2.msra.mxu0 0.0
      %1059 = vmatprep.subr.mxu0 0.0
      %1060 = vmatpush2.msra.mxu0 0.0
      %1061 = vmatprep.subr.mxu0 0.0
      %1062 = vmatpush2.msra.mxu0 0.0
      %1063 = vmatprep.subr.mxu0 0.0
      %1064 = vmatpush2.msra.mxu0 0.0
      %1065 = vmatprep.subr.mxu0 0.0
      %1066 = vmatpush2.msra.mxu0 0.0
      %1067 = vmatprep.subr.mxu0 0.0
      %1068 = vmatpush2.msra.mxu0 0.0
      %1069 = vmatprep.subr.mxu0 0.0
      %1070 = vmatpush2.msra.mxu0 0.0
      %1071 = vmatprep.subr.mxu0 0.0
      %1072 = vmatpush2.msra.mxu0 0.0
      %1073 = vmatprep.subr.mxu0 0.0
      %1074 = vmatpush2.msra.mxu0 0.0
      %1075 = vmatprep.subr.mxu0 0.0
      %1076 = vmatpush2.msra.mxu0 0.0
      %1077 = vmatprep.subr.mxu0 0.0
      %1078 = vmatpush2.msra.mxu0 0.0
      %1079 = vmatprep.subr.mxu0 0.0
      %1080 = vmatpush2.msra.mxu0 0.0
      %1081 = vmatprep.subr.mxu0 0.0
      %1082 = vmatpush2.msra.mxu0 0.0
      %1083 = vmatprep.mubr.f32.mxu0 0.0
      %1084 = vmatmul.mubr.f32.gmra.mxu0 %v600
      %v1085 = vpop.f32.mrf.mxu0
      %v1086 = vadd.f32 %v1017, %v1085
      %v1087 = vpop.f32.mrf.mxu0
      %1088 = vdwg.mxu0
      %s1089 = scalar_lea.vmem %s4, 32
      %v1090 = vld [vmem:[%s1089] sm:$0xff]
      %v1091 = vld [vmem:[%s1089 + $0x8] sm:$0xff]
      %v1092 = vld [vmem:[%s1089 + $0x10] sm:$0xff]
      %v1093 = vld [vmem:[%s1089 + $0x18] sm:$0xff]
      %s1094 = scalar_lea.vmem %s5, 1
      %v1095 = vld [vmem:[%s1094] sm:$0x1]
      %v1097 = vlaneseq
      %v1098 = vshrl.u32 %v1097, 7
      %v1099 = vsub.s32 0, %v1098
      %v1100 = vrot.slane %v1095, %v1099
      %1102 = vmatprep.subr.mxu0 0.0
      %1103 = vmatpush1.msra.mxu0 0.0
      %1104 = vmatprep.subr.mxu0 0.0
      %1105 = vmatpush1.msra.mxu0 0.0
      %1106 = vmatprep.subr.mxu0 0.0
      %1107 = vmatpush1.msra.mxu0 0.0
      %1108 = vmatprep.subr.mxu0 0.0
      %1109 = vmatpush1.msra.mxu0 0.0
      %1110 = vmatprep.subr.mxu0 0.0
      %1111 = vmatpush1.msra.mxu0 0.0
      %1112 = vmatprep.subr.mxu0 0.0
      %1113 = vmatpush1.msra.mxu0 0.0
      %1114 = vmatprep.subr.mxu0 0.0
      %1115 = vmatpush1.msra.mxu0 0.0
      %1116 = vmatprep.subr.mxu0 0.0
      %1117 = vmatpush1.msra.mxu0 0.0
      %1118 = vmatprep.subr.mxu0 0.0
      %1119 = vmatpush1.msra.mxu0 0.0
      %1120 = vmatprep.subr.mxu0 0.0
      %1121 = vmatpush1.msra.mxu0 0.0
      %1122 = vmatprep.subr.mxu0 0.0
      %1123 = vmatpush1.msra.mxu0 0.0
      %1124 = vmatprep.subr.mxu0 0.0
      %1125 = vmatpush1.msra.mxu0 0.0
      %1126 = vmatprep.subr.mxu0 0.0
      %1127 = vmatpush1.msra.mxu0 %v1093
      %1128 = vmatprep.subr.mxu0 0.0
      %1129 = vmatpush1.msra.mxu0 %v1092
      %1130 = vmatprep.subr.mxu0 0.0
      %1131 = vmatpush1.msra.mxu0 %v1091
      %1132 = vmatprep.subr.mxu0 0.0
      %1133 = vmatpush1.msra.mxu0 %v1090
      %1134 = vmatprep.subr.mxu0 0.0
      %1135 = vmatpush2.msra.mxu0 0.0
      %1136 = vmatprep.subr.mxu0 0.0
      %1137 = vmatpush2.msra.mxu0 0.0
      %1138 = vmatprep.subr.mxu0 0.0
      %1139 = vmatpush2.msra.mxu0 0.0
      %1140 = vmatprep.subr.mxu0 0.0
      %1141 = vmatpush2.msra.mxu0 0.0
      %1142 = vmatprep.subr.mxu0 0.0
      %1143 = vmatpush2.msra.mxu0 0.0
      %1144 = vmatprep.subr.mxu0 0.0
      %1145 = vmatpush2.msra.mxu0 0.0
      %1146 = vmatprep.subr.mxu0 0.0
      %1147 = vmatpush2.msra.mxu0 0.0
      %1148 = vmatprep.subr.mxu0 0.0
      %1149 = vmatpush2.msra.mxu0 0.0
      %1150 = vmatprep.subr.mxu0 0.0
      %1151 = vmatpush2.msra.mxu0 0.0
      %1152 = vmatprep.subr.mxu0 0.0
      %1153 = vmatpush2.msra.mxu0 0.0
      %1154 = vmatprep.subr.mxu0 0.0
      %1155 = vmatpush2.msra.mxu0 0.0
      %1156 = vmatprep.subr.mxu0 0.0
      %1157 = vmatpush2.msra.mxu0 0.0
      %1158 = vmatprep.subr.mxu0 0.0
      %1159 = vmatpush2.msra.mxu0 0.0
      %1160 = vmatprep.subr.mxu0 0.0
      %1161 = vmatpush2.msra.mxu0 0.0
      %1162 = vmatprep.subr.mxu0 0.0
      %1163 = vmatpush2.msra.mxu0 0.0
      %1164 = vmatprep.subr.mxu0 0.0
      %1165 = vmatpush2.msra.mxu0 0.0
      %1166 = vmatprep.mubr.f32.mxu0 0.0
      %1167 = vmatmul.mubr.f32.gmra.mxu0 %v600
      %v1168 = vpop.f32.mrf.mxu0
      %v1169 = vadd.f32 %v1100, %v1168
      %v1170 = vpop.f32.mrf.mxu0
      %1171 = vdwg.mxu0
      %s1172 = scalar_lea.vmem %s6, 32
      %v1173 = vld [vmem:[%s1172] sm:$0xff]
      %v1174 = vld [vmem:[%s1172 + $0x8] sm:$0xff]
      %v1175 = vld [vmem:[%s1172 + $0x10] sm:$0xff]
      %v1176 = vld [vmem:[%s1172 + $0x18] sm:$0xff]
      %s1177 = scalar_lea.vmem %s7, 1
      %v1178 = vld [vmem:[%s1177] sm:$0x1]
      %v1180 = vlaneseq
      %v1181 = vshrl.u32 %v1180, 7
      %v1182 = vsub.s32 0, %v1181
      %v1183 = vrot.slane %v1178, %v1182
      %1185 = vmatprep.subr.mxu0 0.0
      %1186 = vmatpush1.msra.mxu0 0.0
      %1187 = vmatprep.subr.mxu0 0.0
      %1188 = vmatpush1.msra.mxu0 0.0
      %1189 = vmatprep.subr.mxu0 0.0
      %1190 = vmatpush1.msra.mxu0 0.0
      %1191 = vmatprep.subr.mxu0 0.0
      %1192 = vmatpush1.msra.mxu0 0.0
      %1193 = vmatprep.subr.mxu0 0.0
      %1194 = vmatpush1.msra.mxu0 0.0
      %1195 = vmatprep.subr.mxu0 0.0
      %1196 = vmatpush1.msra.mxu0 0.0
      %1197 = vmatprep.subr.mxu0 0.0
      %1198 = vmatpush1.msra.mxu0 0.0
      %1199 = vmatprep.subr.mxu0 0.0
      %1200 = vmatpush1.msra.mxu0 0.0
      %1201 = vmatprep.subr.mxu0 0.0
      %1202 = vmatpush1.msra.mxu0 0.0
      %1203 = vmatprep.subr.mxu0 0.0
      %1204 = vmatpush1.msra.mxu0 0.0
      %1205 = vmatprep.subr.mxu0 0.0
      %1206 = vmatpush1.msra.mxu0 0.0
      %1207 = vmatprep.subr.mxu0 0.0
      %1208 = vmatpush1.msra.mxu0 0.0
      %1209 = vmatprep.subr.mxu0 0.0
      %1210 = vmatpush1.msra.mxu0 %v1176
      %1211 = vmatprep.subr.mxu0 0.0
      %1212 = vmatpush1.msra.mxu0 %v1175
      %1213 = vmatprep.subr.mxu0 0.0
      %1214 = vmatpush1.msra.mxu0 %v1174
      %1215 = vmatprep.subr.mxu0 0.0
      %1216 = vmatpush1.msra.mxu0 %v1173
      %1217 = vmatprep.subr.mxu0 0.0
      %1218 = vmatpush2.msra.mxu0 0.0
      %1219 = vmatprep.subr.mxu0 0.0
      %1220 = vmatpush2.msra.mxu0 0.0
      %1221 = vmatprep.subr.mxu0 0.0
      %1222 = vmatpush2.msra.mxu0 0.0
      %1223 = vmatprep.subr.mxu0 0.0
      %1224 = vmatpush2.msra.mxu0 0.0
      %1225 = vmatprep.subr.mxu0 0.0
      %1226 = vmatpush2.msra.mxu0 0.0
      %1227 = vmatprep.subr.mxu0 0.0
      %1228 = vmatpush2.msra.mxu0 0.0
      %1229 = vmatprep.subr.mxu0 0.0
      %1230 = vmatpush2.msra.mxu0 0.0
      %1231 = vmatprep.subr.mxu0 0.0
      %1232 = vmatpush2.msra.mxu0 0.0
      %1233 = vmatprep.subr.mxu0 0.0
      %1234 = vmatpush2.msra.mxu0 0.0
      %1235 = vmatprep.subr.mxu0 0.0
      %1236 = vmatpush2.msra.mxu0 0.0
      %1237 = vmatprep.subr.mxu0 0.0
      %1238 = vmatpush2.msra.mxu0 0.0
      %1239 = vmatprep.subr.mxu0 0.0
      %1240 = vmatpush2.msra.mxu0 0.0
      %1241 = vmatprep.subr.mxu0 0.0
      %1242 = vmatpush2.msra.mxu0 0.0
      %1243 = vmatprep.subr.mxu0 0.0
      %1244 = vmatpush2.msra.mxu0 0.0
      %1245 = vmatprep.subr.mxu0 0.0
      %1246 = vmatpush2.msra.mxu0 0.0
      %1247 = vmatprep.subr.mxu0 0.0
      %1248 = vmatpush2.msra.mxu0 0.0
      %1249 = vmatprep.mubr.f32.mxu0 0.0
      %1250 = vmatmul.mubr.f32.gmra.mxu0 %v600
      %v1251 = vpop.f32.mrf.mxu0
      %v1252 = vadd.f32 %v1183, %v1251
      %v1253 = vpop.f32.mrf.mxu0
      %1254 = vdwg.mxu0
      %v1256 = vsel %vm834, %v1086, 0
      %v1259 = vsel %vm834, %v1169, 0
      %1261 = vmatprep.subr.mxu0 0.0
      %1262 = vmatpush1.xpose.msra.mxu0 0.0
      %1263 = vmatprep.subr.mxu0 0.0
      %1264 = vmatpush1.xpose.msra.mxu0 0.0
      %1265 = vmatprep.subr.mxu0 0.0
      %1266 = vmatpush1.xpose.msra.mxu0 0.0
      %1267 = vmatprep.subr.mxu0 0.0
      %1268 = vmatpush1.xpose.msra.mxu0 0.0
      %1269 = vmatprep.subr.mxu0 0.0
      %1270 = vmatpush1.xpose.msra.mxu0 0.0
      %1271 = vmatprep.subr.mxu0 0.0
      %1272 = vmatpush1.xpose.msra.mxu0 0.0
      %1273 = vmatprep.subr.mxu0 0.0
      %1274 = vmatpush1.xpose.msra.mxu0 0.0
      %1275 = vmatprep.subr.mxu0 0.0
      %1276 = vmatpush1.xpose.msra.mxu0 0.0
      %1277 = vmatprep.subr.mxu0 0.0
      %1278 = vmatpush1.xpose.msra.mxu0 0.0
      %1279 = vmatprep.subr.mxu0 0.0
      %1280 = vmatpush1.xpose.msra.mxu0 0.0
      %1281 = vmatprep.subr.mxu0 0.0
      %1282 = vmatpush1.xpose.msra.mxu0 0.0
      %1283 = vmatprep.subr.mxu0 0.0
      %1284 = vmatpush1.xpose.msra.mxu0 0.0
      %1285 = vmatprep.subr.mxu0 0.0
      %1286 = vmatpush1.xpose.msra.mxu0 0.0
      %1287 = vmatprep.subr.mxu0 0.0
      %1288 = vmatpush1.xpose.msra.mxu0 0.0
      %1289 = vmatprep.subr.mxu0 0.0
      %1290 = vmatpush1.xpose.msra.mxu0 0.0
      %1291 = vmatprep.subr.mxu0 0.0
      %1292 = vmatpush1.xpose.msra.mxu0 %v1259
      %1293 = vmatprep.subr.mxu0 0.0
      %1294 = vmatpush2.xpose.msra.mxu0 0.0
      %1295 = vmatprep.subr.mxu0 0.0
      %1296 = vmatpush2.xpose.msra.mxu0 0.0
      %1297 = vmatprep.subr.mxu0 0.0
      %1298 = vmatpush2.xpose.msra.mxu0 0.0
      %1299 = vmatprep.subr.mxu0 0.0
      %1300 = vmatpush2.xpose.msra.mxu0 0.0
      %1301 = vmatprep.subr.mxu0 0.0
      %1302 = vmatpush2.xpose.msra.mxu0 0.0
      %1303 = vmatprep.subr.mxu0 0.0
      %1304 = vmatpush2.xpose.msra.mxu0 0.0
      %1305 = vmatprep.subr.mxu0 0.0
      %1306 = vmatpush2.xpose.msra.mxu0 0.0
      %1307 = vmatprep.subr.mxu0 0.0
      %1308 = vmatpush2.xpose.msra.mxu0 0.0
      %1309 = vmatprep.subr.mxu0 0.0
      %1310 = vmatpush2.xpose.msra.mxu0 0.0
      %1311 = vmatprep.subr.mxu0 0.0
      %1312 = vmatpush2.xpose.msra.mxu0 0.0
      %1313 = vmatprep.subr.mxu0 0.0
      %1314 = vmatpush2.xpose.msra.mxu0 0.0
      %1315 = vmatprep.subr.mxu0 0.0
      %1316 = vmatpush2.xpose.msra.mxu0 0.0
      %1317 = vmatprep.subr.mxu0 0.0
      %1318 = vmatpush2.xpose.msra.mxu0 0.0
      %1319 = vmatprep.subr.mxu0 0.0
      %1320 = vmatpush2.xpose.msra.mxu0 0.0
      %1321 = vmatprep.subr.mxu0 0.0
      %1322 = vmatpush2.xpose.msra.mxu0 0.0
      %1323 = vmatprep.subr.mxu0 0.0
      %1324 = vmatpush2.xpose.msra.mxu0 0.0
      %1325 = vmatprep.mubr.f32.mxu0 0.0
      %1326 = vmatmul.mubr.f32.gmra.mxu0 %v1256
      %v1327 = vpop.f32.mrf.mxu0
      %v1328 = vadd.f32 0.0, %v1327
      %v1329 = vpop.f32.mrf.mxu0
      %1330 = vdwg.mxu0
      %v1331 = vmul.f32 %v1328, 0.25
      %v1332 = vadd.f32 %v1331, %v916
      %v1333 = vsel %vm919, %v1332, -inf
      %1334 = vmax.xlane.f32.xlu0 %v1333
      %v1335 = vpop.xlane.xlu0 %1334
      %v1336 = vsub.f32 %v1332, %v1335
      %v1337 = vmul.f32 %v1336, 1.442695
      %v1338 = vpow.pop %v1337
      %v1339 = vsel %vm919, %v1338, 0.0
      %1340 = vadd.xlane.f32.xlu0 %v1339
      %v1341 = vpop.xlane.xlu0 %1340
      %v1342 = vrcp.pop %v1341
      %v1343 = vmul.f32 %v1338, %v1342
      %v1345 = vsel %vm919, %v1343, 0
      %1347 = vmatprep.subr.mxu0 0.0
      %1348 = vmatpush1.msra.mxu0 0.0
      %1349 = vmatprep.subr.mxu0 0.0
      %1350 = vmatpush1.msra.mxu0 0.0
      %1351 = vmatprep.subr.mxu0 0.0
      %1352 = vmatpush1.msra.mxu0 0.0
      %1353 = vmatprep.subr.mxu0 0.0
      %1354 = vmatpush1.msra.mxu0 0.0
      %1355 = vmatprep.subr.mxu0 0.0
      %1356 = vmatpush1.msra.mxu0 0.0
      %1357 = vmatprep.subr.mxu0 0.0
      %1358 = vmatpush1.msra.mxu0 0.0
      %1359 = vmatprep.subr.mxu0 0.0
      %1360 = vmatpush1.msra.mxu0 0.0
      %1361 = vmatprep.subr.mxu0 0.0
      %1362 = vmatpush1.msra.mxu0 0.0
      %1363 = vmatprep.subr.mxu0 0.0
      %1364 = vmatpush1.msra.mxu0 0.0
      %1365 = vmatprep.subr.mxu0 0.0
      %1366 = vmatpush1.msra.mxu0 0.0
      %1367 = vmatprep.subr.mxu0 0.0
      %1368 = vmatpush1.msra.mxu0 0.0
      %1369 = vmatprep.subr.mxu0 0.0
      %1370 = vmatpush1.msra.mxu0 0.0
      %1371 = vmatprep.subr.mxu0 0.0
      %1372 = vmatpush1.msra.mxu0 0.0
      %1373 = vmatprep.subr.mxu0 0.0
      %1374 = vmatpush1.msra.mxu0 0.0
      %1375 = vmatprep.subr.mxu0 0.0
      %1376 = vmatpush1.msra.mxu0 0.0
      %1377 = vmatprep.subr.mxu0 0.0
      %1378 = vmatpush1.msra.mxu0 %v1252
      %1379 = vmatprep.subr.mxu0 0.0
      %1380 = vmatpush2.msra.mxu0 0.0
      %1381 = vmatprep.subr.mxu0 0.0
      %1382 = vmatpush2.msra.mxu0 0.0
      %1383 = vmatprep.subr.mxu0 0.0
      %1384 = vmatpush2.msra.mxu0 0.0
      %1385 = vmatprep.subr.mxu0 0.0
      %1386 = vmatpush2.msra.mxu0 0.0
      %1387 = vmatprep.subr.mxu0 0.0
      %1388 = vmatpush2.msra.mxu0 0.0
      %1389 = vmatprep.subr.mxu0 0.0
      %1390 = vmatpush2.msra.mxu0 0.0
      %1391 = vmatprep.subr.mxu0 0.0
      %1392 = vmatpush2.msra.mxu0 0.0
      %1393 = vmatprep.subr.mxu0 0.0
      %1394 = vmatpush2.msra.mxu0 0.0
      %1395 = vmatprep.subr.mxu0 0.0
      %1396 = vmatpush2.msra.mxu0 0.0
      %1397 = vmatprep.subr.mxu0 0.0
      %1398 = vmatpush2.msra.mxu0 0.0
      %1399 = vmatprep.subr.mxu0 0.0
      %1400 = vmatpush2.msra.mxu0 0.0
      %1401 = vmatprep.subr.mxu0 0.0
      %1402 = vmatpush2.msra.mxu0 0.0
      %1403 = vmatprep.subr.mxu0 0.0
      %1404 = vmatpush2.msra.mxu0 0.0
      %1405 = vmatprep.subr.mxu0 0.0
      %1406 = vmatpush2.msra.mxu0 0.0
      %1407 = vmatprep.subr.mxu0 0.0
      %1408 = vmatpush2.msra.mxu0 0.0
      %1409 = vmatprep.subr.mxu0 0.0
      %1410 = vmatpush2.msra.mxu0 0.0
      %1411 = vmatprep.mubr.f32.mxu0 0.0
      %1412 = vmatmul.mubr.f32.gmra.mxu0 %v1345
      %v1413 = vpop.f32.mrf.mxu0
      %v1414 = vadd.f32 0.0, %v1413
      %v1415 = vpop.f32.mrf.mxu0
      %1416 = vdwg.mxu0
      %s1417 = scalar_lea.vmem %s8, 16
      %v1418 = vld [vmem:[%s1417] sm:$0xff]
      %v1419 = vld [vmem:[%s1417 + $0x8] sm:$0xff]
      %v1421 = vsel %vm834, %v1414, 0
      %1423 = vmatprep.subr.mxu0 0.0
      %1424 = vmatpush1.msra.mxu0 0.0
      %1425 = vmatprep.subr.mxu0 0.0
      %1426 = vmatpush1.msra.mxu0 0.0
      %1427 = vmatprep.subr.mxu0 0.0
      %1428 = vmatpush1.msra.mxu0 0.0
      %1429 = vmatprep.subr.mxu0 0.0
      %1430 = vmatpush1.msra.mxu0 0.0
      %1431 = vmatprep.subr.mxu0 0.0
      %1432 = vmatpush1.msra.mxu0 0.0
      %1433 = vmatprep.subr.mxu0 0.0
      %1434 = vmatpush1.msra.mxu0 0.0
      %1435 = vmatprep.subr.mxu0 0.0
      %1436 = vmatpush1.msra.mxu0 0.0
      %1437 = vmatprep.subr.mxu0 0.0
      %1438 = vmatpush1.msra.mxu0 0.0
      %1439 = vmatprep.subr.mxu0 0.0
      %1440 = vmatpush1.msra.mxu0 0.0
      %1441 = vmatprep.subr.mxu0 0.0
      %1442 = vmatpush1.msra.mxu0 0.0
      %1443 = vmatprep.subr.mxu0 0.0
      %1444 = vmatpush1.msra.mxu0 0.0
      %1445 = vmatprep.subr.mxu0 0.0
      %1446 = vmatpush1.msra.mxu0 0.0
      %1447 = vmatprep.subr.mxu0 0.0
      %1448 = vmatpush1.msra.mxu0 0.0
      %1449 = vmatprep.subr.mxu0 0.0
      %1450 = vmatpush1.msra.mxu0 0.0
      %1451 = vmatprep.subr.mxu0 0.0
      %1452 = vmatpush1.msra.mxu0 %v1419
      %1453 = vmatprep.subr.mxu0 0.0
      %1454 = vmatpush1.msra.mxu0 %v1418
      %1455 = vmatprep.subr.mxu0 0.0
      %1456 = vmatpush2.msra.mxu0 0.0
      %1457 = vmatprep.subr.mxu0 0.0
      %1458 = vmatpush2.msra.mxu0 0.0
      %1459 = vmatprep.subr.mxu0 0.0
      %1460 = vmatpush2.msra.mxu0 0.0
      %1461 = vmatprep.subr.mxu0 0.0
      %1462 = vmatpush2.msra.mxu0 0.0
      %1463 = vmatprep.subr.mxu0 0.0
      %1464 = vmatpush2.msra.mxu0 0.0
      %1465 = vmatprep.subr.mxu0 0.0
      %1466 = vmatpush2.msra.mxu0 0.0
      %1467 = vmatprep.subr.mxu0 0.0
      %1468 = vmatpush2.msra.mxu0 0.0
      %1469 = vmatprep.subr.mxu0 0.0
      %1470 = vmatpush2.msra.mxu0 0.0
      %1471 = vmatprep.subr.mxu0 0.0
      %1472 = vmatpush2.msra.mxu0 0.0
      %1473 = vmatprep.subr.mxu0 0.0
      %1474 = vmatpush2.msra.mxu0 0.0
      %1475 = vmatprep.subr.mxu0 0.0
      %1476 = vmatpush2.msra.mxu0 0.0
      %1477 = vmatprep.subr.mxu0 0.0
      %1478 = vmatpush2.msra.mxu0 0.0
      %1479 = vmatprep.subr.mxu0 0.0
      %1480 = vmatpush2.msra.mxu0 0.0
      %1481 = vmatprep.subr.mxu0 0.0
      %1482 = vmatpush2.msra.mxu0 0.0
      %1483 = vmatprep.subr.mxu0 0.0
      %1484 = vmatpush2.msra.mxu0 0.0
      %1485 = vmatprep.subr.mxu0 0.0
      %1486 = vmatpush2.msra.mxu0 0.0
      %1487 = vmatprep.mubr.f32.mxu0 0.0
      %1488 = vmatmul.mubr.f32.gmra.mxu0 %v1421
      %v1489 = vpop.f32.mrf.mxu0
      %v1490 = vadd.f32 0.0, %v1489
      %v1491 = vpop.f32.mrf.mxu0
      %1492 = vdwg.mxu0
      %v1494 = vsel %vm834, %v1001, 0
      %1496 = vmatprep.subr.mxu0 0.0
      %1497 = vmatpush1.msra.mxu0 0.0
      %1498 = vmatprep.subr.mxu0 0.0
      %1499 = vmatpush1.msra.mxu0 0.0
      %1500 = vmatprep.subr.mxu0 0.0
      %1501 = vmatpush1.msra.mxu0 0.0
      %1502 = vmatprep.subr.mxu0 0.0
      %1503 = vmatpush1.msra.mxu0 0.0
      %1504 = vmatprep.subr.mxu0 0.0
      %1505 = vmatpush1.msra.mxu0 0.0
      %1506 = vmatprep.subr.mxu0 0.0
      %1507 = vmatpush1.msra.mxu0 0.0
      %1508 = vmatprep.subr.mxu0 0.0
      %1509 = vmatpush1.msra.mxu0 0.0
      %1510 = vmatprep.subr.mxu0 0.0
      %1511 = vmatpush1.msra.mxu0 0.0
      %1512 = vmatprep.subr.mxu0 0.0
      %1513 = vmatpush1.msra.mxu0 0.0
      %1514 = vmatprep.subr.mxu0 0.0
      %1515 = vmatpush1.msra.mxu0 0.0
      %1516 = vmatprep.subr.mxu0 0.0
      %1517 = vmatpush1.msra.mxu0 0.0
      %1518 = vmatprep.subr.mxu0 0.0
      %1519 = vmatpush1.msra.mxu0 0.0
      %1520 = vmatprep.subr.mxu0 0.0
      %1521 = vmatpush1.msra.mxu0 0.0
      %1522 = vmatprep.subr.mxu0 0.0
      %1523 = vmatpush1.msra.mxu0 0.0
      %1524 = vmatprep.subr.mxu0 0.0
      %1525 = vmatpush1.msra.mxu0 %v1005
      %1526 = vmatprep.subr.mxu0 0.0
      %1527 = vmatpush1.msra.mxu0 %v1004
      %1528 = vmatprep.subr.mxu0 0.0
      %1529 = vmatpush2.msra.mxu0 0.0
      %1530 = vmatprep.subr.mxu0 0.0
      %1531 = vmatpush2.msra.mxu0 0.0
      %1532 = vmatprep.subr.mxu0 0.0
      %1533 = vmatpush2.msra.mxu0 0.0
      %1534 = vmatprep.subr.mxu0 0.0
      %1535 = vmatpush2.msra.mxu0 0.0
      %1536 = vmatprep.subr.mxu0 0.0
      %1537 = vmatpush2.msra.mxu0 0.0
      %1538 = vmatprep.subr.mxu0 0.0
      %1539 = vmatpush2.msra.mxu0 0.0
      %1540 = vmatprep.subr.mxu0 0.0
      %1541 = vmatpush2.msra.mxu0 0.0
      %1542 = vmatprep.subr.mxu0 0.0
      %1543 = vmatpush2.msra.mxu0 0.0
      %1544 = vmatprep.subr.mxu0 0.0
      %1545 = vmatpush2.msra.mxu0 0.0
      %1546 = vmatprep.subr.mxu0 0.0
      %1547 = vmatpush2.msra.mxu0 0.0
      %1548 = vmatprep.subr.mxu0 0.0
      %1549 = vmatpush2.msra.mxu0 0.0
      %1550 = vmatprep.subr.mxu0 0.0
      %1551 = vmatpush2.msra.mxu0 0.0
      %1552 = vmatprep.subr.mxu0 0.0
      %1553 = vmatpush2.msra.mxu0 0.0
      %1554 = vmatprep.subr.mxu0 0.0
      %1555 = vmatpush2.msra.mxu0 0.0
      %1556 = vmatprep.subr.mxu0 0.0
      %1557 = vmatpush2.msra.mxu0 0.0
      %1558 = vmatprep.subr.mxu0 0.0
      %1559 = vmatpush2.msra.mxu0 0.0
      %1560 = vmatprep.mubr.f32.mxu0 0.0
      %1561 = vmatmul.mubr.f32.gmra.mxu0 %v1494
      %v1562 = vpop.f32.mrf.mxu0
      %v1563 = vadd.f32 %v1490, %v1562
      %v1564 = vpop.f32.mrf.mxu0
      %1565 = vdwg.mxu0
      %v1566 = vld [vmem:[%s9] sm:$0x1]
      %v1568 = vlaneseq
      %v1569 = vshrl.u32 %v1568, 7
      %v1570 = vsub.s32 0, %v1569
      %v1571 = vrot.slane %v1566, %v1570
      %v1573 = vadd.f32 %v1563, %v1571
      %v1574 = vadd.f32 %v1573, %v585
      %v1575 = vsel %vm598, %v1574, 0.0
      %1576 = vadd.xlane.f32.xlu0 %v1575
      %v1577 = vpop.xlane.xlu0 %1576
      %v1578 = vrcp.pop 32.0
      %v1579 = vmul.f32 %v1577, %v1578
      %v1580 = vsub.f32 %v1574, %v1579
      %v1581 = vmul.f32 %v1580, %v1580
      %v1582 = vsel %vm598, %v1581, 0.0
      %1583 = vadd.xlane.f32.xlu0 %v1582
      %v1584 = vpop.xlane.xlu0 %1583
      %v1585 = vmul.f32 %v1584, %v1578
      %v1586 = vadd.f32 %v1585, 1e-12
      %v1587 = vrsqrt.pop %v1586
      %v1588 = vmul.f32 %v1580, %v1587
      %v1589 = vld [vmem:[%s10] sm:$0x1]
      %v1591 = vlaneseq
      %v1592 = vshrl.u32 %v1591, 7
      %v1593 = vsub.s32 0, %v1592
      %v1594 = vrot.slane %v1589, %v1593
      %v1596 = vmul.f32 %v1588, %v1594
      %v1597 = vld [vmem:[%s11] sm:$0x1]
      %v1599 = vlaneseq
      %v1600 = vshrl.u32 %v1599, 7
      %v1601 = vsub.s32 0, %v1600
      %v1602 = vrot.slane %v1597, %v1601
      %v1604 = vadd.f32 %v1596, %v1602
      %v1605 = vld [vmem:[%s12] sm:$0xff]
      %v1606 = vld [vmem:[%s12 + $0x8] sm:$0xff]
      %v1607 = vld [vmem:[%s12 + $0x10] sm:$0xff]
      %v1608 = vld [vmem:[%s12 + $0x18] sm:$0xff]
      %v1609 = vld [vmem:[%s13] sm:$0x1]
      %v1611 = vlaneseq
      %v1612 = vshrl.u32 %v1611, 7
      %v1613 = vsub.s32 0, %v1612
      %v1614 = vrot.slane %v1609, %v1613
      %v1617 = vsel %vm598, %v1604, 0
      %1619 = vmatprep.subr.mxu0 0.0
      %1620 = vmatpush1.msra.mxu0 0.0
      %1621 = vmatprep.subr.mxu0 0.0
      %1622 = vmatpush1.msra.mxu0 0.0
      %1623 = vmatprep.subr.mxu0 0.0
      %1624 = vmatpush1.msra.mxu0 0.0
      %1625 = vmatprep.subr.mxu0 0.0
      %1626 = vmatpush1.msra.mxu0 0.0
      %1627 = vmatprep.subr.mxu0 0.0
      %1628 = vmatpush1.msra.mxu0 0.0
      %1629 = vmatprep.subr.mxu0 0.0
      %1630 = vmatpush1.msra.mxu0 0.0
      %1631 = vmatprep.subr.mxu0 0.0
      %1632 = vmatpush1.msra.mxu0 0.0
      %1633 = vmatprep.subr.mxu0 0.0
      %1634 = vmatpush1.msra.mxu0 0.0
      %1635 = vmatprep.subr.mxu0 0.0
      %1636 = vmatpush1.msra.mxu0 0.0
      %1637 = vmatprep.subr.mxu0 0.0
      %1638 = vmatpush1.msra.mxu0 0.0
      %1639 = vmatprep.subr.mxu0 0.0
      %1640 = vmatpush1.msra.mxu0 0.0
      %1641 = vmatprep.subr.mxu0 0.0
      %1642 = vmatpush1.msra.mxu0 0.0
      %1643 = vmatprep.subr.mxu0 0.0
      %1644 = vmatpush1.msra.mxu0 %v1608
      %1645 = vmatprep.subr.mxu0 0.0
      %1646 = vmatpush1.msra.mxu0 %v1607
      %1647 = vmatprep.subr.mxu0 0.0
      %1648 = vmatpush1.msra.mxu0 %v1606
      %1649 = vmatprep.subr.mxu0 0.0
      %1650 = vmatpush1.msra.mxu0 %v1605
      %1651 = vmatprep.subr.mxu0 0.0
      %1652 = vmatpush2.msra.mxu0 0.0
      %1653 = vmatprep.subr.mxu0 0.0
      %1654 = vmatpush2.msra.mxu0 0.0
      %1655 = vmatprep.subr.mxu0 0.0
      %1656 = vmatpush2.msra.mxu0 0.0
      %1657 = vmatprep.subr.mxu0 0.0
      %1658 = vmatpush2.msra.mxu0 0.0
      %1659 = vmatprep.subr.mxu0 0.0
      %1660 = vmatpush2.msra.mxu0 0.0
      %1661 = vmatprep.subr.mxu0 0.0
      %1662 = vmatpush2.msra.mxu0 0.0
      %1663 = vmatprep.subr.mxu0 0.0
      %1664 = vmatpush2.msra.mxu0 0.0
      %1665 = vmatprep.subr.mxu0 0.0
      %1666 = vmatpush2.msra.mxu0 0.0
      %1667 = vmatprep.subr.mxu0 0.0
      %1668 = vmatpush2.msra.mxu0 0.0
      %1669 = vmatprep.subr.mxu0 0.0
      %1670 = vmatpush2.msra.mxu0 0.0
      %1671 = vmatprep.subr.mxu0 0.0
      %1672 = vmatpush2.msra.mxu0 0.0
      %1673 = vmatprep.subr.mxu0 0.0
      %1674 = vmatpush2.msra.mxu0 0.0
      %1675 = vmatprep.subr.mxu0 0.0
      %1676 = vmatpush2.msra.mxu0 0.0
      %1677 = vmatprep.subr.mxu0 0.0
      %1678 = vmatpush2.msra.mxu0 0.0
      %1679 = vmatprep.subr.mxu0 0.0
      %1680 = vmatpush2.msra.mxu0 0.0
      %1681 = vmatprep.subr.mxu0 0.0
      %1682 = vmatpush2.msra.mxu0 0.0
      %1683 = vmatprep.mubr.f32.mxu0 0.0
      %1684 = vmatmul.mubr.f32.gmra.mxu0 %v1617
      %v1685 = vpop.f32.mrf.mxu0
      %v1686 = vadd.f32 %v1614, %v1685
      %v1687 = vpop.f32.mrf.mxu0
      %1688 = vdwg.mxu0
      %v1689 = vmul.f32 %v1686, 0.5
      %v1690 = vmul.f32 %v1686, 0.70710677
      %v1691 = verf.f32.pop %v1690
      %v1692 = vadd.f32 %v1691, 1.0
      %v1693 = vmul.f32 %v1689, %v1692
      %v1694 = vld [vmem:[%s14] sm:$0xff]
      %v1695 = vld [vmem:[%s14 + $0x8] sm:$0xff]
      %v1696 = vld [vmem:[%s14 + $0x10] sm:$0xff]
      %v1697 = vld [vmem:[%s14 + $0x18] sm:$0xff]
      %v1698 = vld [vmem:[%s14 + $0x20] sm:$0xff]
      %v1699 = vld [vmem:[%s14 + $0x28] sm:$0xff]
      %v1700 = vld [vmem:[%s14 + $0x30] sm:$0xff]
      %v1701 = vld [vmem:[%s14 + $0x38] sm:$0xff]
      %v1702 = vld [vmem:[%s15] sm:$0x1]
      %v1704 = vlaneseq
      %v1705 = vshrl.u32 %v1704, 7
      %v1706 = vsub.s32 0, %v1705
      %v1707 = vrot.slane %v1702, %v1706
      %vm1709 = vcmask 523264
      %v1711 = vsel %vm1709, %v1693, 0
      %1713 = vmatprep.subr.mxu0 0.0
      %1714 = vmatpush1.msra.mxu0 0.0
      %1715 = vmatprep.subr.mxu0 0.0
      %1716 = vmatpush1.msra.mxu0 0.0
      %1717 = vmatprep.subr.mxu0 0.0
      %1718 = vmatpush1.msra.mxu0 0.0
      %1719 = vmatprep.subr.mxu0 0.0
      %1720 = vmatpush1.msra.mxu0 0.0
      %1721 = vmatprep.subr.mxu0 0.0
      %1722 = vmatpush1.msra.mxu0 0.0
      %1723 = vmatprep.subr.mxu0 0.0
      %1724 = vmatpush1.msra.mxu0 0.0
      %1725 = vmatprep.subr.mxu0 0.0
      %1726 = vmatpush1.msra.mxu0 0.0
      %1727 = vmatprep.subr.mxu0 0.0
      %1728 = vmatpush1.msra.mxu0 0.0
      %1729 = vmatprep.subr.mxu0 0.0
      %1730 = vmatpush1.msra.mxu0 %v1701
      %1731 = vmatprep.subr.mxu0 0.0
      %1732 = vmatpush1.msra.mxu0 %v1700
      %1733 = vmatprep.subr.mxu0 0.0
      %1734 = vmatpush1.msra.mxu0 %v1699
      %1735 = vmatprep.subr.mxu0 0.0
      %1736 = vmatpush1.msra.mxu0 %v1698
      %1737 = vmatprep.subr.mxu0 0.0
      %1738 = vmatpush1.msra.mxu0 %v1697
      %1739 = vmatprep.subr.mxu0 0.0
      %1740 = vmatpush1.msra.mxu0 %v1696
      %1741 = vmatprep.subr.mxu0 0.0
      %1742 = vmatpush1.msra.mxu0 %v1695
      %1743 = vmatprep.subr.mxu0 0.0
      %1744 = vmatpush1.msra.mxu0 %v1694
      %1745 = vmatprep.subr.mxu0 0.0
      %1746 = vmatpush2.msra.mxu0 0.0
      %1747 = vmatprep.subr.mxu0 0.0
      %1748 = vmatpush2.msra.mxu0 0.0
      %1749 = vmatprep.subr.mxu0 0.0
      %1750 = vmatpush2.msra.mxu0 0.0
      %1751 = vmatprep.subr.mxu0 0.0
      %1752 = vmatpush2.msra.mxu0 0.0
      %1753 = vmatprep.subr.mxu0 0.0
      %1754 = vmatpush2.msra.mxu0 0.0
      %1755 = vmatprep.subr.mxu0 0.0
      %1756 = vmatpush2.msra.mxu0 0.0
      %1757 = vmatprep.subr.mxu0 0.0
      %1758 = vmatpush2.msra.mxu0 0.0
      %1759 = vmatprep.subr.mxu0 0.0
      %1760 = vmatpush2.msra.mxu0 0.0
      %1761 = vmatprep.subr.mxu0 0.0
      %1762 = vmatpush2.msra.mxu0 0.0
      %1763 = vmatprep.subr.mxu0 0.0
      %1764 = vmatpush2.msra.mxu0 0.0
      %1765 = vmatprep.subr.mxu0 0.0
      %1766 = vmatpush2.msra.mxu0 0.0
      %1767 = vmatprep.subr.mxu0 0.0
      %1768 = vmatpush2.msra.mxu0 0.0
      %1769 = vmatprep.subr.mxu0 0.0
      %1770 = vmatpush2.msra.mxu0 0.0
      %1771 = vmatprep.subr.mxu0 0.0
      %1772 = vmatpush2.msra.mxu0 0.0
      %1773 = vmatprep.subr.mxu0 0.0
      %1774 = vmatpush2.msra.mxu0 0.0
      %1775 = vmatprep.subr.mxu0 0.0
      %1776 = vmatpush2.msra.mxu0 0.0
      %1777 = vmatprep.mubr.f32.mxu0 0.0
      %1778 = vmatmul.mubr.f32.gmra.mxu0 %v1711
      %v1779 = vpop.f32.mrf.mxu0
      %v1780 = vadd.f32 %v1707, %v1779
      %v1781 = vpop.f32.mrf.mxu0
      %1782 = vdwg.mxu0
      %v1783 = vadd.f32 %v1780, %v1604
      %v1784 = vsel %vm598, %v1783, 0.0
      %1785 = vadd.xlane.f32.xlu0 %v1784
      %v1786 = vpop.xlane.xlu0 %1785
      %v1787 = vmul.f32 %v1786, %v1578
      %v1788 = vsub.f32 %v1783, %v1787
      %v1789 = vmul.f32 %v1788, %v1788
      %v1790 = vsel %vm598, %v1789, 0.0
      %1791 = vadd.xlane.f32.xlu0 %v1790
      %v1792 = vpop.xlane.xlu0 %1791
      %v1793 = vmul.f32 %v1792, %v1578
      %v1794 = vadd.f32 %v1793, 1e-12
      %v1795 = vrsqrt.pop %v1794
      %v1796 = vmul.f32 %v1788, %v1795
      %v1797 = vld [vmem:[%s16] sm:$0x1]
      %v1799 = vlaneseq
      %v1800 = vshrl.u32 %v1799, 7
      %v1801 = vsub.s32 0, %v1800
      %v1802 = vrot.slane %v1797, %v1801
      %v1804 = vmul.f32 %v1796, %v1802
      %v1805 = vld [vmem:[%s17] sm:$0x1]
      %v1807 = vlaneseq
      %v1808 = vshrl.u32 %v1807, 7
      %v1809 = vsub.s32 0, %v1808
      %v1810 = vrot.slane %v1805, %v1809
      %v1812 = vadd.f32 %v1804, %v1810
      %1813 = vst.msk [vmem:[%s584] sm:$0xff] %vm598, %v1812
      %p1814 = scmp.lt.s32.totalorder %s29, 1
      %s1815 = scalar_select %p1814, %s29, 1
      %s1816 = smul.addr %s1815, 8
      %s1817 = scalar_lea.vmem %s18, %s1816
      // Predicated region
      $region93: #{bert_mixup_forward.4} parent=91 // pred_check
        %p1818 = pneg %p435
      $region94: #{bert_mixup_forward.4} parent=91 // pred_check_branch
        %1820 = sbr.rel (%p1818) target = $region96
      $region95: #{bert_mixup_forward.4} parent=91 // pred_region
        _
      $region96: #{bert_mixup_forward.4} parent=91 // pred_fallthru
        _
    $region92: #{bert_mixup_forward.4} parent=5 // pred_fallthru
      _
    %p1821 = scmp.le.s32.totalorder 2, %s24
    // Predicated region
    $region97: #{bert_mixup_forward.4} parent=5 // pred_check
      %p1822 = pneg %p1821
    $region98: #{bert_mixup_forward.4} parent=5 // pred_check_branch
      %1824 = sbr.rel (%p1822) target = $region100
    $region99: #{bert_mixup_forward.4} parent=5 // pred_region
      %s1825 = ssub.s32 %s24, 2
      // Predicated region
      $region101: #{bert_mixup_forward.4} parent=99 // pred_check
        %p1826 = pneg %p441
      $region102: #{bert_mixup_forward.4} parent=99 // pred_check_branch
        %1828 = sbr.rel (%p1826) target = $region104
      $region103: #{bert_mixup_forward.4} parent=99 // pred_region
        %p1829 = scmp.lt.s32.totalorder %s30, 1
        %s1830 = scalar_select %p1829, %s30, 1
        %s1831 = smul.addr %s1830, 8
        %s1832 = scalar_lea.vmem %s18, %s1831
      $region104: #{bert_mixup_forward.4} parent=99 // pred_fallthru
        _
    $region100: #{bert_mixup_forward.4} parent=5 // pred_fallthru
      _
  $region6: #{bert_mixup_forward.4} parent=0 // loop_footer
    %s28 = sadd.s32 1, %s24
  $region7: #{bert_mixup_forward.4} parent=0 // loop_footer_branch
    %23 = sbr.rel target = $region3
  $region8: #{bert_mixup_forward.4} parent=0 // loop_exit
    _

</llo_original>
